<compile_context>
chip_gen: v7x
topology: tpu7x:2x2x1
jax: 0.10.0
libtpu: 0.0.40
codegen_flags: <defaults>
</compile_context>

<pallas_src>
import functools
import numpy as np
import jax
import jax.numpy as jnp
from jax import lax
from jax.experimental import pallas as pl
from jax.experimental.pallas import tpu as pltpu

F32 = jnp.float32
BF16 = jnp.bfloat16
LN_EPS = 1e-5
VMEM_LIMIT = 48 * 1024 * 1024   # fits v5e/v6e (128 MiB phys) and v7x (64 MiB phys)


def _q_tile(sq, target=256):
    """Largest multiple-of-8 divisor of sq <= target (fallback: whole sq)."""
    if sq <= target:
        return sq
    t = (target // 8) * 8
    while t >= 8:
        if sq % t == 0:
            return t
        t -= 8
    return sq


def _row_tile(n, target=512):
    """Row tile for the (N, D) kernels; rows are padded up to a multiple."""
    return n if n <= target else target


# --------------------- fused MHA + residual + LayerNorm ---------------------


def _mha_ln_kernel(xq_ref, xkv_ref, wq_ref, bq_ref, wkv_ref, bkv_ref,
                   wo_ref, bo_ref, g_ref, beta_ref, o_ref,
                   *, num_heads, dk, dv, hdk, eps):
    xq = xq_ref[0]                                    # (TQ, D)  bf16
    xkv = xkv_ref[0]                                  # (Sk, D)  bf16

    # Fused projections: one matmul for Q, one for K|V (bf16 MXU, f32 acc).
    q = jnp.dot(xq, wq_ref[...], preferred_element_type=F32) + bq_ref[...]
    kv = jnp.dot(xkv, wkv_ref[...], preferred_element_type=F32) + bkv_ref[...]
    k = kv[:, :hdk]
    v = kv[:, hdk:]

    scale = 1.0 / float(np.sqrt(dk))
    heads = []
    for h in range(num_heads):                        # static unrolled head loop
        qh = q[:, h * dk:(h + 1) * dk].astype(BF16)   # (TQ, dk)
        kh = k[:, h * dk:(h + 1) * dk].astype(BF16)   # (Sk, dk)
        vh = v[:, h * dv:(h + 1) * dv].astype(BF16)   # (Sk, dv)
        # contract trailing dims directly (no in-kernel transpose of K)
        s = lax.dot_general(qh, kh, (((1,), (1,)), ((), ())),
                            preferred_element_type=F32) * scale   # (TQ, Sk)
        s = s - jnp.max(s, axis=-1, keepdims=True)
        e = jnp.exp(s)
        p = e * pl.reciprocal(jnp.sum(e, axis=-1, keepdims=True), approx=True)
        heads.append(jnp.dot(p.astype(BF16), vh, preferred_element_type=F32))

    # ONE (TQ, H*dv) @ (H*dv, D) output projection instead of H tiny K=dv matmuls.
    cat = jnp.concatenate(heads, axis=-1).astype(BF16)            # (TQ, H*dv)
    attn = jnp.dot(cat, wo_ref[...], preferred_element_type=F32) + bo_ref[...]

    # residual + LayerNorm (f32 math)
    y = xq.astype(F32) + attn
    mean = jnp.mean(y, axis=-1, keepdims=True)
    var = jnp.mean(jnp.square(y - mean), axis=-1, keepdims=True)
    yhat = (y - mean) * lax.rsqrt(var + eps)
    o_ref[0] = (yhat * g_ref[...] + beta_ref[...]).astype(o_ref.dtype)


def fused_mha_ln(x_q, x_kv, p, lp, num_heads, eps=LN_EPS):
    """LayerNorm(x_q + MHA(x_q, x_kv, x_kv)); one pallas_call, grid (B, Sq//TQ)."""
    B, Sq, D = x_q.shape
    Sk = x_kv.shape[1]
    Hdk = p["wq"].shape[1]
    Hdkv = p["wkv"].shape[1]
    Hdv = Hdkv - Hdk
    dk = Hdk // num_heads
    dv = Hdv // num_heads
    TQ = _q_tile(Sq)
    kernel = functools.partial(_mha_ln_kernel, num_heads=num_heads,
                               dk=dk, dv=dv, hdk=Hdk, eps=eps)
    return pl.pallas_call(
        kernel,
        out_shape=jax.ShapeDtypeStruct((B, Sq, D), BF16),
        grid=(B, Sq // TQ),
        in_specs=[
            pl.BlockSpec((1, TQ, D), lambda b, qi: (b, qi, 0)),
            pl.BlockSpec((1, Sk, D), lambda b, qi: (b, 0, 0)),
            pl.BlockSpec((D, Hdk), lambda b, qi: (0, 0)),
            pl.BlockSpec((1, Hdk), lambda b, qi: (0, 0)),
            pl.BlockSpec((D, Hdkv), lambda b, qi: (0, 0)),
            pl.BlockSpec((1, Hdkv), lambda b, qi: (0, 0)),
            pl.BlockSpec((Hdv, D), lambda b, qi: (0, 0)),
            pl.BlockSpec((1, D), lambda b, qi: (0, 0)),
            pl.BlockSpec((1, D), lambda b, qi: (0, 0)),
            pl.BlockSpec((1, D), lambda b, qi: (0, 0)),
        ],
        out_specs=pl.BlockSpec((1, TQ, D), lambda b, qi: (b, qi, 0)),
        compiler_params=pltpu.CompilerParams(
            dimension_semantics=("parallel", "parallel"),
            vmem_limit_bytes=VMEM_LIMIT),
    )(x_q, x_kv,
      p["wq"], p["bq"].reshape(1, Hdk),
      p["wkv"], p["bkv"].reshape(1, Hdkv),
      p["wo"], p["bo"].reshape(1, D),
      lp["g"].reshape(1, D), lp["b"].reshape(1, D))


# --------------------- fused FFN + residual + LayerNorm ----------------------


def _ffn_ln_kernel(x_ref, w1_ref, b1_ref, w2_ref, b2_ref, g_ref, beta_ref,
                   o_ref, *, eps):
    x = x_ref[...]                                           # (TM, D) bf16
    h = jnp.dot(x, w1_ref[...], preferred_element_type=F32) + b1_ref[...]
    h = jnp.maximum(h, 0.0)
    o = jnp.dot(h.astype(BF16), w2_ref[...],
                preferred_element_type=F32) + b2_ref[...]
    y = x.astype(F32) + o
    mean = jnp.mean(y, axis=-1, keepdims=True)
    var = jnp.mean(jnp.square(y - mean), axis=-1, keepdims=True)
    yhat = (y - mean) * lax.rsqrt(var + eps)
    o_ref[...] = (yhat * g_ref[...] + beta_ref[...]).astype(o_ref.dtype)


def fused_ffn_ln(x, p, lp, eps=LN_EPS):
    """LayerNorm(x + FFN(x)); row-tiled over N = B*S with padded tail rows."""
    B, S, D = x.shape
    FF = p["w1"].shape[1]
    N = B * S
    TM = _row_tile(N)
    n_pad = pl.cdiv(N, TM) * TM
    x2d = x.reshape(N, D)
    if n_pad != N:
        x2d = jnp.pad(x2d, ((0, n_pad - N), (0, 0)))
    out = pl.pallas_call(
        functools.partial(_ffn_ln_kernel, eps=eps),
        out_shape=jax.ShapeDtypeStruct((n_pad, D), BF16),
        grid=(n_pad // TM,),
        in_specs=[
            pl.BlockSpec((TM, D), lambda i: (i, 0)),
            pl.BlockSpec((D, FF), lambda i: (0, 0)),
            pl.BlockSpec((1, FF), lambda i: (0, 0)),
            pl.BlockSpec((FF, D), lambda i: (0, 0)),
            pl.BlockSpec((1, D), lambda i: (0, 0)),
            pl.BlockSpec((1, D), lambda i: (0, 0)),
            pl.BlockSpec((1, D), lambda i: (0, 0)),
        ],
        out_specs=pl.BlockSpec((TM, D), lambda i: (i, 0)),
        compiler_params=pltpu.CompilerParams(
            dimension_semantics=("parallel",),
            vmem_limit_bytes=VMEM_LIMIT),
    )(x2d, p["w1"], p["b1"].reshape(1, FF), p["w2"], p["b2"].reshape(1, D),
      lp["g"].reshape(1, D), lp["b"].reshape(1, D))
    return out[:N].reshape(B, S, D)


# ----------------------- fused output Linear + softmax -----------------------


def _out_softmax_kernel(x_ref, w_ref, b_ref, o_ref):
    logits = jnp.dot(x_ref[...], w_ref[...],
                     preferred_element_type=F32) + b_ref[...]
    logits = logits - jnp.max(logits, axis=-1, keepdims=True)
    e = jnp.exp(logits)
    inv = 1.0 / jnp.sum(e, axis=-1, keepdims=True)   # one divide per row
    o_ref[...] = (e * inv).astype(o_ref.dtype)       # broadcast multiply


def fused_out_softmax(x, p):
    B, S, D = x.shape
    Dout = p["w"].shape[1]
    N = B * S
    TM = _row_tile(N)
    n_pad = pl.cdiv(N, TM) * TM
    x2d = x.reshape(N, D)
    if n_pad != N:
        x2d = jnp.pad(x2d, ((0, n_pad - N), (0, 0)))
    out = pl.pallas_call(
        _out_softmax_kernel,
        out_shape=jax.ShapeDtypeStruct((n_pad, Dout), F32),
        grid=(n_pad // TM,),
        in_specs=[
            pl.BlockSpec((TM, D), lambda i: (i, 0)),
            pl.BlockSpec((D, Dout), lambda i: (0, 0)),
            pl.BlockSpec((1, Dout), lambda i: (0, 0)),
        ],
        out_specs=pl.BlockSpec((TM, Dout), lambda i: (i, 0)),
        compiler_params=pltpu.CompilerParams(
            dimension_semantics=("parallel",),
            vmem_limit_bytes=VMEM_LIMIT),
    )(x2d, p["w"], p["b"].reshape(1, Dout))
    return out[:N].reshape(B, S, Dout)


# ------------------------------ model (glue) --------------------------------


def position_encoding(seq_len, dim_model):
    pos = jnp.arange(seq_len, dtype=F32).reshape(1, -1, 1)
    dim = jnp.arange(dim_model, dtype=F32).reshape(1, 1, -1)
    phase = pos / (1e4 ** (dim / dim_model))
    even = (jnp.arange(dim_model).reshape(1, 1, -1) % 2) == 0
    return jnp.where(even, jnp.sin(phase), jnp.cos(phase))


def init_linear(key, din, dout):
    k1, k2 = jax.random.split(key)
    bound = 1.0 / float(np.sqrt(din))
    return {
        # weights stored in bf16 (MXU operand / HBM traffic), biases in f32.
        "w": jax.random.uniform(k1, (din, dout), F32, -bound, bound).astype(BF16),
        "b": jax.random.uniform(k2, (dout,), F32, -bound, bound),
    }


def init_mha(key, num_heads, dim_model, dim_k, dim_v):
    kq, kk, kv, ko = jax.random.split(key, 4)
    q = init_linear(kq, dim_model, num_heads * dim_k)
    k = init_linear(kk, dim_model, num_heads * dim_k)
    v = init_linear(kv, dim_model, num_heads * dim_v)
    o = init_linear(ko, num_heads * dim_v, dim_model)
    return {"wq": q["w"], "bq": q["b"],
            # K and V projections fused into one matmul operand.
            "wkv": jnp.concatenate([k["w"], v["w"]], axis=1),
            "bkv": jnp.concatenate([k["b"], v["b"]], axis=0),
            "wo": o["w"], "bo": o["b"]}


def init_ln(dim_model):
    return {"g": jnp.ones((dim_model,), F32), "b": jnp.zeros((dim_model,), F32)}


def init_ffn(key, dim_model, dim_ff):
    k1, k2 = jax.random.split(key)
    l1, l2 = init_linear(k1, dim_model, dim_ff), init_linear(k2, dim_ff, dim_model)
    return {"w1": l1["w"], "b1": l1["b"], "w2": l2["w"], "b2": l2["b"]}


def encoder_layer(p, src, H):
    src = fused_mha_ln(src, src, p["attn"], p["ln1"], H)
    return fused_ffn_ln(src, p["ff"], p["ln2"])


def decoder_layer(p, tgt, memory, H):
    tgt = fused_mha_ln(tgt, tgt, p["attn1"], p["ln1"], H)
    tgt = fused_mha_ln(tgt, memory, p["attn2"], p["ln2"], H)
    return fused_ffn_ln(tgt, p["ff"], p["ln3"])


def transformer_forward(params, src_tokens, tgt_tokens, num_heads):
    # ---- encoder ----
    src = jnp.take(params["enc_emb"], src_tokens, axis=0)        # (B, Ss, D)
    src = (src + position_encoding(src.shape[1], src.shape[2])).astype(BF16)
    for lp in params["enc_layers"]:
        src = encoder_layer(lp, src, num_heads)
    memory = src
    # ---- decoder ----
    tgt = jnp.take(params["dec_emb"], tgt_tokens, axis=0)        # (B, St, D)
    tgt = (tgt + position_encoding(tgt.shape[1], tgt.shape[2])).astype(BF16)
    for lp in params["dec_layers"]:
        tgt = decoder_layer(lp, tgt, memory, num_heads)
    # final Linear(dim_model -> dim_model) + softmax over the feature dim,
    # as in the reference TransformerDecoder.
    return fused_out_softmax(tgt, params["out_lin"])


def init_params(key, vocab, dim_model, num_heads, dim_ff, n_enc, n_dec):
    dk = dv = dim_model // num_heads
    keys = iter(jax.random.split(key, 4 + 4 * n_enc + 6 * n_dec + 8))
    params = {
        "enc_emb": jax.random.normal(next(keys), (vocab, dim_model), F32) * 0.02,
        "dec_emb": jax.random.normal(next(keys), (vocab, dim_model), F32) * 0.02,
        "enc_layers": [],
        "dec_layers": [],
        "out_lin": init_linear(next(keys), dim_model, dim_model),
    }
    for _ in range(n_enc):
        params["enc_layers"].append({
            "attn": init_mha(next(keys), num_heads, dim_model, dk, dv),
            "ln1": init_ln(dim_model),
            "ff": init_ffn(next(keys), dim_model, dim_ff),
            "ln2": init_ln(dim_model),
        })
    for _ in range(n_dec):
        params["dec_layers"].append({
            "attn1": init_mha(next(keys), num_heads, dim_model, dk, dv),
            "ln1": init_ln(dim_model),
            "attn2": init_mha(next(keys), num_heads, dim_model, dk, dv),
            "ln2": init_ln(dim_model),
            "ff": init_ffn(next(keys), dim_model, dim_ff),
            "ln3": init_ln(dim_model),
        })
    return params


if __name__ == "__main__":
    # Small, self-consistent config (module defaults are 512/8/2048/6-layer;
    # at real scale D and FF are multiples of 128 so all blocks are lane-dense).
    VOCAB = 50
    DIM_MODEL = 32
    NUM_HEADS = 4
    DIM_FF = 64
    N_ENC = 2
    N_DEC = 2
    B = 2
    SRC_SEQ = 8
    TGT_SEQ = 8

    root = jax.random.PRNGKey(0)
    kp, ks, kt = jax.random.split(root, 3)
    params = init_params(kp, VOCAB, DIM_MODEL, NUM_HEADS, DIM_FF, N_ENC, N_DEC)

    src_tokens = jax.random.randint(ks, (B, SRC_SEQ), 0, VOCAB, dtype=jnp.int32)
    tgt_tokens = jax.random.randint(kt, (B, TGT_SEQ), 0, VOCAB, dtype=jnp.int32)

    fwd = jax.jit(functools.partial(transformer_forward, num_heads=NUM_HEADS))
    out = fwd(params, src_tokens, tgt_tokens)
    out = jax.block_until_ready(out)

    assert out.shape == (B, TGT_SEQ, DIM_MODEL), out.shape
    # output of the decoder is softmax over the last dim -> rows sum to 1
    assert np.allclose(np.asarray(jnp.sum(out, axis=-1)), 1.0, atol=1e-3)
    print("KERNEL_OK")
</pallas_src>

<mosaic_0001>
module attributes {stable_mosaic.version = 11 : i64} {
  func.func @_mha_ln_kernel(%arg0: i32, %arg1: i32, %arg2: memref<1x8x32xbf16, #tpu.memory_space<vmem>>, %arg3: memref<1x8x32xbf16, #tpu.memory_space<vmem>>, %arg4: memref<32x32xbf16, #tpu.memory_space<vmem>>, %arg5: memref<1x32xf32, #tpu.memory_space<vmem>>, %arg6: memref<32x64xbf16, #tpu.memory_space<vmem>>, %arg7: memref<1x64xf32, #tpu.memory_space<vmem>>, %arg8: memref<32x32xbf16, #tpu.memory_space<vmem>>, %arg9: memref<1x32xf32, #tpu.memory_space<vmem>>, %arg10: memref<1x32xf32, #tpu.memory_space<vmem>>, %arg11: memref<1x32xf32, #tpu.memory_space<vmem>>, %arg12: memref<1x8x32xbf16, #tpu.memory_space<vmem>>) attributes {dimension_semantics = [#tpu.dimension_semantics<parallel>, #tpu.dimension_semantics<parallel>], iteration_bounds = array<i64: 2, 1>, scalar_prefetch = 0 : i64, scratch_operands = 0 : i64, tpu.core_type = #tpu.core_type<tc>, window_params = [{transform_indices = @transform_0, window_bounds = array<i64: 1, 8, 32>}, {transform_indices = @transform_1, window_bounds = array<i64: 1, 8, 32>}, {pipeline_mode = #tpu.pipeline_mode<synchronous>, transform_indices = @transform_2, window_bounds = array<i64: 32, 32>}, {pipeline_mode = #tpu.pipeline_mode<synchronous>, transform_indices = @transform_3, window_bounds = array<i64: 1, 32>}, {pipeline_mode = #tpu.pipeline_mode<synchronous>, transform_indices = @transform_4, window_bounds = array<i64: 32, 64>}, {pipeline_mode = #tpu.pipeline_mode<synchronous>, transform_indices = @transform_5, window_bounds = array<i64: 1, 64>}, {pipeline_mode = #tpu.pipeline_mode<synchronous>, transform_indices = @transform_6, window_bounds = array<i64: 32, 32>}, {pipeline_mode = #tpu.pipeline_mode<synchronous>, transform_indices = @transform_7, window_bounds = array<i64: 1, 32>}, {pipeline_mode = #tpu.pipeline_mode<synchronous>, transform_indices = @transform_8, window_bounds = array<i64: 1, 32>}, {pipeline_mode = #tpu.pipeline_mode<synchronous>, transform_indices = @transform_9, window_bounds = array<i64: 1, 32>}, {transform_indices = @transform_10, window_bounds = array<i64: 1, 8, 32>}]} {
    %c0 = arith.constant 0 : index
    %c0_0 = arith.constant 0 : index
    %c0_1 = arith.constant 0 : index
    %0 = vector.load %arg2[%c0, %c0_0, %c0_1] : memref<1x8x32xbf16, #tpu.memory_space<vmem>>, vector<1x8x32xbf16>
    %1 = vector.shape_cast %0 : vector<1x8x32xbf16> to vector<8x32xbf16>
    %c0_2 = arith.constant 0 : index
    %c0_3 = arith.constant 0 : index
    %c0_4 = arith.constant 0 : index
    %2 = vector.load %arg3[%c0_2, %c0_3, %c0_4] : memref<1x8x32xbf16, #tpu.memory_space<vmem>>, vector<1x8x32xbf16>
    %3 = vector.shape_cast %2 : vector<1x8x32xbf16> to vector<8x32xbf16>
    %c0_5 = arith.constant 0 : index
    %c0_6 = arith.constant 0 : index
    %4 = vector.load %arg4[%c0_5, %c0_6] : memref<32x32xbf16, #tpu.memory_space<vmem>>, vector<32x32xbf16>
    %cst = arith.constant dense<0.000000e+00> : vector<8x32xf32>
    %5 = tpu.matmul %1, %4, %cst {dimension_numbers = #tpu.dot_dimension_numbers<[1], [0], [0], [1], [0, 0, 1, 1], [], []>} : vector<8x32xbf16>, vector<32x32xbf16>, vector<8x32xf32> -> vector<8x32xf32>
    %c0_7 = arith.constant 0 : index
    %c0_8 = arith.constant 0 : index
    %6 = vector.load %arg5[%c0_7, %c0_8] : memref<1x32xf32, #tpu.memory_space<vmem>>, vector<1x32xf32>
    %7 = vector.broadcast %6 : vector<1x32xf32> to vector<8x32xf32>
    %8 = arith.addf %5, %7 : vector<8x32xf32>
    %c0_9 = arith.constant 0 : index
    %c0_10 = arith.constant 0 : index
    %9 = vector.load %arg6[%c0_9, %c0_10] : memref<32x64xbf16, #tpu.memory_space<vmem>>, vector<32x64xbf16>
    %cst_11 = arith.constant dense<0.000000e+00> : vector<8x64xf32>
    %10 = tpu.matmul %3, %9, %cst_11 {dimension_numbers = #tpu.dot_dimension_numbers<[1], [0], [0], [1], [0, 0, 1, 1], [], []>} : vector<8x32xbf16>, vector<32x64xbf16>, vector<8x64xf32> -> vector<8x64xf32>
    %c0_12 = arith.constant 0 : index
    %c0_13 = arith.constant 0 : index
    %11 = vector.load %arg7[%c0_12, %c0_13] : memref<1x64xf32, #tpu.memory_space<vmem>>, vector<1x64xf32>
    %12 = vector.broadcast %11 : vector<1x64xf32> to vector<8x64xf32>
    %13 = arith.addf %10, %12 : vector<8x64xf32>
    %14 = vector.extract_strided_slice %13 {offsets = [0, 0], sizes = [8, 32], strides = [1, 1]} : vector<8x64xf32> to vector<8x32xf32>
    %15 = vector.extract_strided_slice %13 {offsets = [0, 32], sizes = [8, 32], strides = [1, 1]} : vector<8x64xf32> to vector<8x32xf32>
    %16 = vector.extract_strided_slice %8 {offsets = [0, 0], sizes = [8, 8], strides = [1, 1]} : vector<8x32xf32> to vector<8x8xf32>
    %17 = arith.truncf %16 : vector<8x8xf32> to vector<8x8xbf16>
    %18 = vector.extract_strided_slice %14 {offsets = [0, 0], sizes = [8, 8], strides = [1, 1]} : vector<8x32xf32> to vector<8x8xf32>
    %19 = arith.truncf %18 : vector<8x8xf32> to vector<8x8xbf16>
    %20 = vector.extract_strided_slice %15 {offsets = [0, 0], sizes = [8, 8], strides = [1, 1]} : vector<8x32xf32> to vector<8x8xf32>
    %21 = arith.truncf %20 : vector<8x8xf32> to vector<8x8xbf16>
    %cst_14 = arith.constant dense<0.000000e+00> : vector<8x8xf32>
    %22 = tpu.matmul %17, %19, %cst_14 {dimension_numbers = #tpu.dot_dimension_numbers<[1], [1], [0], [0], [0, 0, 1, 0], [], []>} : vector<8x8xbf16>, vector<8x8xbf16>, vector<8x8xf32> -> vector<8x8xf32>
    %cst_15 = arith.constant 0.353553385 : f32
    %23 = vector.broadcast %cst_15 : f32 to vector<8x8xf32>
    %24 = arith.mulf %22, %23 : vector<8x8xf32>
    %cst_16 = arith.constant dense<0xFF800000> : vector<8xf32>
    %25 = vector.multi_reduction <maximumf>, %24, %cst_16 [1] : vector<8x8xf32> to vector<8xf32>
    %26 = vector.shape_cast %25 : vector<8xf32> to vector<8x1xf32>
    %27 = vector.broadcast %26 : vector<8x1xf32> to vector<8x8xf32>
    %28 = arith.subf %24, %27 : vector<8x8xf32>
    %29 = math.exp %28 : vector<8x8xf32>
    %cst_17 = arith.constant dense<0.000000e+00> : vector<8xf32>
    %30 = vector.multi_reduction <add>, %29, %cst_17 [1] : vector<8x8xf32> to vector<8xf32>
    %31 = vector.shape_cast %30 : vector<8xf32> to vector<8x1xf32>
    %32 = tpu.reciprocal %31 {approx = true} : vector<8x1xf32> -> vector<8x1xf32>
    %33 = vector.broadcast %32 : vector<8x1xf32> to vector<8x8xf32>
    %34 = arith.mulf %29, %33 : vector<8x8xf32>
    %35 = arith.truncf %34 : vector<8x8xf32> to vector<8x8xbf16>
    %cst_18 = arith.constant dense<0.000000e+00> : vector<8x8xf32>
    %36 = tpu.matmul %35, %21, %cst_18 {dimension_numbers = #tpu.dot_dimension_numbers<[1], [0], [0], [1], [0, 0, 1, 1], [], []>} : vector<8x8xbf16>, vector<8x8xbf16>, vector<8x8xf32> -> vector<8x8xf32>
    %37 = vector.extract_strided_slice %8 {offsets = [0, 8], sizes = [8, 8], strides = [1, 1]} : vector<8x32xf32> to vector<8x8xf32>
    %38 = arith.truncf %37 : vector<8x8xf32> to vector<8x8xbf16>
    %39 = vector.extract_strided_slice %14 {offsets = [0, 8], sizes = [8, 8], strides = [1, 1]} : vector<8x32xf32> to vector<8x8xf32>
    %40 = arith.truncf %39 : vector<8x8xf32> to vector<8x8xbf16>
    %41 = vector.extract_strided_slice %15 {offsets = [0, 8], sizes = [8, 8], strides = [1, 1]} : vector<8x32xf32> to vector<8x8xf32>
    %42 = arith.truncf %41 : vector<8x8xf32> to vector<8x8xbf16>
    %cst_19 = arith.constant dense<0.000000e+00> : vector<8x8xf32>
    %43 = tpu.matmul %38, %40, %cst_19 {dimension_numbers = #tpu.dot_dimension_numbers<[1], [1], [0], [0], [0, 0, 1, 0], [], []>} : vector<8x8xbf16>, vector<8x8xbf16>, vector<8x8xf32> -> vector<8x8xf32>
    %cst_20 = arith.constant 0.353553385 : f32
    %44 = vector.broadcast %cst_20 : f32 to vector<8x8xf32>
    %45 = arith.mulf %43, %44 : vector<8x8xf32>
    %cst_21 = arith.constant dense<0xFF800000> : vector<8xf32>
    %46 = vector.multi_reduction <maximumf>, %45, %cst_21 [1] : vector<8x8xf32> to vector<8xf32>
    %47 = vector.shape_cast %46 : vector<8xf32> to vector<8x1xf32>
    %48 = vector.broadcast %47 : vector<8x1xf32> to vector<8x8xf32>
    %49 = arith.subf %45, %48 : vector<8x8xf32>
    %50 = math.exp %49 : vector<8x8xf32>
    %cst_22 = arith.constant dense<0.000000e+00> : vector<8xf32>
    %51 = vector.multi_reduction <add>, %50, %cst_22 [1] : vector<8x8xf32> to vector<8xf32>
    %52 = vector.shape_cast %51 : vector<8xf32> to vector<8x1xf32>
    %53 = tpu.reciprocal %52 {approx = true} : vector<8x1xf32> -> vector<8x1xf32>
    %54 = vector.broadcast %53 : vector<8x1xf32> to vector<8x8xf32>
    %55 = arith.mulf %50, %54 : vector<8x8xf32>
    %56 = arith.truncf %55 : vector<8x8xf32> to vector<8x8xbf16>
    %cst_23 = arith.constant dense<0.000000e+00> : vector<8x8xf32>
    %57 = tpu.matmul %56, %42, %cst_23 {dimension_numbers = #tpu.dot_dimension_numbers<[1], [0], [0], [1], [0, 0, 1, 1], [], []>} : vector<8x8xbf16>, vector<8x8xbf16>, vector<8x8xf32> -> vector<8x8xf32>
    %58 = vector.extract_strided_slice %8 {offsets = [0, 16], sizes = [8, 8], strides = [1, 1]} : vector<8x32xf32> to vector<8x8xf32>
    %59 = arith.truncf %58 : vector<8x8xf32> to vector<8x8xbf16>
    %60 = vector.extract_strided_slice %14 {offsets = [0, 16], sizes = [8, 8], strides = [1, 1]} : vector<8x32xf32> to vector<8x8xf32>
    %61 = arith.truncf %60 : vector<8x8xf32> to vector<8x8xbf16>
    %62 = vector.extract_strided_slice %15 {offsets = [0, 16], sizes = [8, 8], strides = [1, 1]} : vector<8x32xf32> to vector<8x8xf32>
    %63 = arith.truncf %62 : vector<8x8xf32> to vector<8x8xbf16>
    %cst_24 = arith.constant dense<0.000000e+00> : vector<8x8xf32>
    %64 = tpu.matmul %59, %61, %cst_24 {dimension_numbers = #tpu.dot_dimension_numbers<[1], [1], [0], [0], [0, 0, 1, 0], [], []>} : vector<8x8xbf16>, vector<8x8xbf16>, vector<8x8xf32> -> vector<8x8xf32>
    %cst_25 = arith.constant 0.353553385 : f32
    %65 = vector.broadcast %cst_25 : f32 to vector<8x8xf32>
    %66 = arith.mulf %64, %65 : vector<8x8xf32>
    %cst_26 = arith.constant dense<0xFF800000> : vector<8xf32>
    %67 = vector.multi_reduction <maximumf>, %66, %cst_26 [1] : vector<8x8xf32> to vector<8xf32>
    %68 = vector.shape_cast %67 : vector<8xf32> to vector<8x1xf32>
    %69 = vector.broadcast %68 : vector<8x1xf32> to vector<8x8xf32>
    %70 = arith.subf %66, %69 : vector<8x8xf32>
    %71 = math.exp %70 : vector<8x8xf32>
    %cst_27 = arith.constant dense<0.000000e+00> : vector<8xf32>
    %72 = vector.multi_reduction <add>, %71, %cst_27 [1] : vector<8x8xf32> to vector<8xf32>
    %73 = vector.shape_cast %72 : vector<8xf32> to vector<8x1xf32>
    %74 = tpu.reciprocal %73 {approx = true} : vector<8x1xf32> -> vector<8x1xf32>
    %75 = vector.broadcast %74 : vector<8x1xf32> to vector<8x8xf32>
    %76 = arith.mulf %71, %75 : vector<8x8xf32>
    %77 = arith.truncf %76 : vector<8x8xf32> to vector<8x8xbf16>
    %cst_28 = arith.constant dense<0.000000e+00> : vector<8x8xf32>
    %78 = tpu.matmul %77, %63, %cst_28 {dimension_numbers = #tpu.dot_dimension_numbers<[1], [0], [0], [1], [0, 0, 1, 1], [], []>} : vector<8x8xbf16>, vector<8x8xbf16>, vector<8x8xf32> -> vector<8x8xf32>
    %79 = vector.extract_strided_slice %8 {offsets = [0, 24], sizes = [8, 8], strides = [1, 1]} : vector<8x32xf32> to vector<8x8xf32>
    %80 = arith.truncf %79 : vector<8x8xf32> to vector<8x8xbf16>
    %81 = vector.extract_strided_slice %14 {offsets = [0, 24], sizes = [8, 8], strides = [1, 1]} : vector<8x32xf32> to vector<8x8xf32>
    %82 = arith.truncf %81 : vector<8x8xf32> to vector<8x8xbf16>
    %83 = vector.extract_strided_slice %15 {offsets = [0, 24], sizes = [8, 8], strides = [1, 1]} : vector<8x32xf32> to vector<8x8xf32>
    %84 = arith.truncf %83 : vector<8x8xf32> to vector<8x8xbf16>
    %cst_29 = arith.constant dense<0.000000e+00> : vector<8x8xf32>
    %85 = tpu.matmul %80, %82, %cst_29 {dimension_numbers = #tpu.dot_dimension_numbers<[1], [1], [0], [0], [0, 0, 1, 0], [], []>} : vector<8x8xbf16>, vector<8x8xbf16>, vector<8x8xf32> -> vector<8x8xf32>
    %cst_30 = arith.constant 0.353553385 : f32
    %86 = vector.broadcast %cst_30 : f32 to vector<8x8xf32>
    %87 = arith.mulf %85, %86 : vector<8x8xf32>
    %cst_31 = arith.constant dense<0xFF800000> : vector<8xf32>
    %88 = vector.multi_reduction <maximumf>, %87, %cst_31 [1] : vector<8x8xf32> to vector<8xf32>
    %89 = vector.shape_cast %88 : vector<8xf32> to vector<8x1xf32>
    %90 = vector.broadcast %89 : vector<8x1xf32> to vector<8x8xf32>
    %91 = arith.subf %87, %90 : vector<8x8xf32>
    %92 = math.exp %91 : vector<8x8xf32>
    %cst_32 = arith.constant dense<0.000000e+00> : vector<8xf32>
    %93 = vector.multi_reduction <add>, %92, %cst_32 [1] : vector<8x8xf32> to vector<8xf32>
    %94 = vector.shape_cast %93 : vector<8xf32> to vector<8x1xf32>
    %95 = tpu.reciprocal %94 {approx = true} : vector<8x1xf32> -> vector<8x1xf32>
    %96 = vector.broadcast %95 : vector<8x1xf32> to vector<8x8xf32>
    %97 = arith.mulf %92, %96 : vector<8x8xf32>
    %98 = arith.truncf %97 : vector<8x8xf32> to vector<8x8xbf16>
    %cst_33 = arith.constant dense<0.000000e+00> : vector<8x8xf32>
    %99 = tpu.matmul %98, %84, %cst_33 {dimension_numbers = #tpu.dot_dimension_numbers<[1], [0], [0], [1], [0, 0, 1, 1], [], []>} : vector<8x8xbf16>, vector<8x8xbf16>, vector<8x8xf32> -> vector<8x8xf32>
    %100 = tpu.concatenate %36, %57, %78, %99 in 1 : vector<8x8xf32>, vector<8x8xf32>, vector<8x8xf32>, vector<8x8xf32> -> vector<8x32xf32>
    %101 = arith.truncf %100 : vector<8x32xf32> to vector<8x32xbf16>
    %c0_34 = arith.constant 0 : index
    %c0_35 = arith.constant 0 : index
    %102 = vector.load %arg8[%c0_34, %c0_35] : memref<32x32xbf16, #tpu.memory_space<vmem>>, vector<32x32xbf16>
    %cst_36 = arith.constant dense<0.000000e+00> : vector<8x32xf32>
    %103 = tpu.matmul %101, %102, %cst_36 {dimension_numbers = #tpu.dot_dimension_numbers<[1], [0], [0], [1], [0, 0, 1, 1], [], []>} : vector<8x32xbf16>, vector<32x32xbf16>, vector<8x32xf32> -> vector<8x32xf32>
    %c0_37 = arith.constant 0 : index
    %c0_38 = arith.constant 0 : index
    %104 = vector.load %arg9[%c0_37, %c0_38] : memref<1x32xf32, #tpu.memory_space<vmem>>, vector<1x32xf32>
    %105 = vector.broadcast %104 : vector<1x32xf32> to vector<8x32xf32>
    %106 = arith.addf %103, %105 : vector<8x32xf32>
    %107 = arith.extf %1 : vector<8x32xbf16> to vector<8x32xf32>
    %108 = arith.addf %107, %106 : vector<8x32xf32>
    %cst_39 = arith.constant dense<0.000000e+00> : vector<8xf32>
    %109 = vector.multi_reduction <add>, %108, %cst_39 [1] : vector<8x32xf32> to vector<8xf32>
    %110 = vector.shape_cast %109 : vector<8xf32> to vector<8x1xf32>
    %cst_40 = arith.constant 3.200000e+01 : f32
    %111 = vector.broadcast %cst_40 : f32 to vector<8x1xf32>
    %112 = arith.divf %110, %111 : vector<8x1xf32>
    %113 = vector.broadcast %112 : vector<8x1xf32> to vector<8x32xf32>
    %114 = arith.subf %108, %113 : vector<8x32xf32>
    %115 = arith.mulf %114, %114 : vector<8x32xf32>
    %cst_41 = arith.constant dense<0.000000e+00> : vector<8xf32>
    %116 = vector.multi_reduction <add>, %115, %cst_41 [1] : vector<8x32xf32> to vector<8xf32>
    %117 = vector.shape_cast %116 : vector<8xf32> to vector<8x1xf32>
    %cst_42 = arith.constant 3.200000e+01 : f32
    %118 = vector.broadcast %cst_42 : f32 to vector<8x1xf32>
    %119 = arith.divf %117, %118 : vector<8x1xf32>
    %120 = vector.broadcast %112 : vector<8x1xf32> to vector<8x32xf32>
    %121 = arith.subf %108, %120 : vector<8x32xf32>
    %cst_43 = arith.constant 9.99999974E-6 : f32
    %122 = vector.broadcast %cst_43 : f32 to vector<8x1xf32>
    %123 = arith.addf %119, %122 : vector<8x1xf32>
    %124 = math.rsqrt %123 : vector<8x1xf32>
    %125 = vector.broadcast %124 : vector<8x1xf32> to vector<8x32xf32>
    %126 = arith.mulf %121, %125 : vector<8x32xf32>
    %c0_44 = arith.constant 0 : index
    %c0_45 = arith.constant 0 : index
    %127 = vector.load %arg10[%c0_44, %c0_45] : memref<1x32xf32, #tpu.memory_space<vmem>>, vector<1x32xf32>
    %128 = vector.broadcast %127 : vector<1x32xf32> to vector<8x32xf32>
    %129 = arith.mulf %126, %128 : vector<8x32xf32>
    %c0_46 = arith.constant 0 : index
    %c0_47 = arith.constant 0 : index
    %130 = vector.load %arg11[%c0_46, %c0_47] : memref<1x32xf32, #tpu.memory_space<vmem>>, vector<1x32xf32>
    %131 = vector.broadcast %130 : vector<1x32xf32> to vector<8x32xf32>
    %132 = arith.addf %129, %131 : vector<8x32xf32>
    %133 = arith.truncf %132 : vector<8x32xf32> to vector<8x32xbf16>
    %c0_48 = arith.constant 0 : index
    %c0_49 = arith.constant 0 : index
    %c0_50 = arith.constant 0 : index
    %134 = vector.load %arg12[%c0_48, %c0_49, %c0_50] : memref<1x8x32xbf16, #tpu.memory_space<vmem>>, vector<1x8x32xbf16>
    %135 = vector.shape_cast %134 : vector<1x8x32xbf16> to vector<8x32xbf16>
    %136 = vector.shape_cast %133 : vector<8x32xbf16> to vector<1x8x32xbf16>
    tpu.vector_store %arg12[%c0_48, %c0_49, %c0_50], %136 {strides = array<i32>} : memref<1x8x32xbf16, #tpu.memory_space<vmem>>, vector<1x8x32xbf16>,
    return
  }
  func.func @transform_0(%arg0: i32, %arg1: i32) -> (i32, i32, i32) {
    %c0_i32 = arith.constant 0 : i32
    %c0_i32_0 = arith.constant 0 : i32
    return %arg0, %arg1, %c0_i32 : i32, i32, i32
  }
  func.func @transform_1(%arg0: i32, %arg1: i32) -> (i32, i32, i32) {
    %c0_i32 = arith.constant 0 : i32
    %c0_i32_0 = arith.constant 0 : i32
    %c0_i32_1 = arith.constant 0 : i32
    return %arg0, %c0_i32, %c0_i32_0 : i32, i32, i32
  }
  func.func @transform_2(%arg0: i32, %arg1: i32) -> (i32, i32) {
    %c0_i32 = arith.constant 0 : i32
    %c0_i32_0 = arith.constant 0 : i32
    %c0_i32_1 = arith.constant 0 : i32
    return %c0_i32, %c0_i32_0 : i32, i32
  }
  func.func @transform_3(%arg0: i32, %arg1: i32) -> (i32, i32) {
    %c0_i32 = arith.constant 0 : i32
    %c0_i32_0 = arith.constant 0 : i32
    %c0_i32_1 = arith.constant 0 : i32
    return %c0_i32, %c0_i32_0 : i32, i32
  }
  func.func @transform_4(%arg0: i32, %arg1: i32) -> (i32, i32) {
    %c0_i32 = arith.constant 0 : i32
    %c0_i32_0 = arith.constant 0 : i32
    %c0_i32_1 = arith.constant 0 : i32
    return %c0_i32, %c0_i32_0 : i32, i32
  }
  func.func @transform_5(%arg0: i32, %arg1: i32) -> (i32, i32) {
    %c0_i32 = arith.constant 0 : i32
    %c0_i32_0 = arith.constant 0 : i32
    %c0_i32_1 = arith.constant 0 : i32
    return %c0_i32, %c0_i32_0 : i32, i32
  }
  func.func @transform_6(%arg0: i32, %arg1: i32) -> (i32, i32) {
    %c0_i32 = arith.constant 0 : i32
    %c0_i32_0 = arith.constant 0 : i32
    %c0_i32_1 = arith.constant 0 : i32
    return %c0_i32, %c0_i32_0 : i32, i32
  }
  func.func @transform_7(%arg0: i32, %arg1: i32) -> (i32, i32) {
    %c0_i32 = arith.constant 0 : i32
    %c0_i32_0 = arith.constant 0 : i32
    %c0_i32_1 = arith.constant 0 : i32
    return %c0_i32, %c0_i32_0 : i32, i32
  }
  func.func @transform_8(%arg0: i32, %arg1: i32) -> (i32, i32) {
    %c0_i32 = arith.constant 0 : i32
    %c0_i32_0 = arith.constant 0 : i32
    %c0_i32_1 = arith.constant 0 : i32
    return %c0_i32, %c0_i32_0 : i32, i32
  }
  func.func @transform_9(%arg0: i32, %arg1: i32) -> (i32, i32) {
    %c0_i32 = arith.constant 0 : i32
    %c0_i32_0 = arith.constant 0 : i32
    %c0_i32_1 = arith.constant 0 : i32
    return %c0_i32, %c0_i32_0 : i32, i32
  }
  func.func @transform_10(%arg0: i32, %arg1: i32) -> (i32, i32, i32) {
    %c0_i32 = arith.constant 0 : i32
    %c0_i32_0 = arith.constant 0 : i32
    return %arg0, %arg1, %c0_i32 : i32, i32, i32
  }
}

module attributes {stable_mosaic.version = 11 : i64} {
  func.func @_ffn_ln_kernel(%arg0: i32, %arg1: memref<16x32xbf16, #tpu.memory_space<vmem>>, %arg2: memref<32x64xbf16, #tpu.memory_space<vmem>>, %arg3: memref<1x64xf32, #tpu.memory_space<vmem>>, %arg4: memref<64x32xbf16, #tpu.memory_space<vmem>>, %arg5: memref<1x32xf32, #tpu.memory_space<vmem>>, %arg6: memref<1x32xf32, #tpu.memory_space<vmem>>, %arg7: memref<1x32xf32, #tpu.memory_space<vmem>>, %arg8: memref<16x32xbf16, #tpu.memory_space<vmem>>) attributes {dimension_semantics = [#tpu.dimension_semantics<parallel>], iteration_bounds = array<i64: 1>, scalar_prefetch = 0 : i64, scratch_operands = 0 : i64, tpu.core_type = #tpu.core_type<tc>, window_params = [{transform_indices = @transform_0, window_bounds = array<i64: 16, 32>}, {pipeline_mode = #tpu.pipeline_mode<synchronous>, transform_indices = @transform_1, window_bounds = array<i64: 32, 64>}, {pipeline_mode = #tpu.pipeline_mode<synchronous>, transform_indices = @transform_2, window_bounds = array<i64: 1, 64>}, {pipeline_mode = #tpu.pipeline_mode<synchronous>, transform_indices = @transform_3, window_bounds = array<i64: 64, 32>}, {pipeline_mode = #tpu.pipeline_mode<synchronous>, transform_indices = @transform_4, window_bounds = array<i64: 1, 32>}, {pipeline_mode = #tpu.pipeline_mode<synchronous>, transform_indices = @transform_5, window_bounds = array<i64: 1, 32>}, {pipeline_mode = #tpu.pipeline_mode<synchronous>, transform_indices = @transform_6, window_bounds = array<i64: 1, 32>}, {transform_indices = @transform_7, window_bounds = array<i64: 16, 32>}]} {
    %c0 = arith.constant 0 : index
    %c0_0 = arith.constant 0 : index
    %0 = vector.load %arg1[%c0, %c0_0] : memref<16x32xbf16, #tpu.memory_space<vmem>>, vector<16x32xbf16>
    %c0_1 = arith.constant 0 : index
    %c0_2 = arith.constant 0 : index
    %1 = vector.load %arg2[%c0_1, %c0_2] : memref<32x64xbf16, #tpu.memory_space<vmem>>, vector<32x64xbf16>
    %cst = arith.constant dense<0.000000e+00> : vector<16x64xf32>
    %2 = tpu.matmul %0, %1, %cst {dimension_numbers = #tpu.dot_dimension_numbers<[1], [0], [0], [1], [0, 0, 1, 1], [], []>} : vector<16x32xbf16>, vector<32x64xbf16>, vector<16x64xf32> -> vector<16x64xf32>
    %c0_3 = arith.constant 0 : index
    %c0_4 = arith.constant 0 : index
    %3 = vector.load %arg3[%c0_3, %c0_4] : memref<1x64xf32, #tpu.memory_space<vmem>>, vector<1x64xf32>
    %4 = vector.broadcast %3 : vector<1x64xf32> to vector<16x64xf32>
    %5 = arith.addf %2, %4 : vector<16x64xf32>
    %cst_5 = arith.constant 0.000000e+00 : f32
    %6 = vector.broadcast %cst_5 : f32 to vector<16x64xf32>
    %7 = arith.maximumf %5, %6 : vector<16x64xf32>
    %8 = arith.truncf %7 : vector<16x64xf32> to vector<16x64xbf16>
    %c0_6 = arith.constant 0 : index
    %c0_7 = arith.constant 0 : index
    %9 = vector.load %arg4[%c0_6, %c0_7] : memref<64x32xbf16, #tpu.memory_space<vmem>>, vector<64x32xbf16>
    %cst_8 = arith.constant dense<0.000000e+00> : vector<16x32xf32>
    %10 = tpu.matmul %8, %9, %cst_8 {dimension_numbers = #tpu.dot_dimension_numbers<[1], [0], [0], [1], [0, 0, 1, 1], [], []>} : vector<16x64xbf16>, vector<64x32xbf16>, vector<16x32xf32> -> vector<16x32xf32>
    %c0_9 = arith.constant 0 : index
    %c0_10 = arith.constant 0 : index
    %11 = vector.load %arg5[%c0_9, %c0_10] : memref<1x32xf32, #tpu.memory_space<vmem>>, vector<1x32xf32>
    %12 = vector.broadcast %11 : vector<1x32xf32> to vector<16x32xf32>
    %13 = arith.addf %10, %12 : vector<16x32xf32>
    %14 = arith.extf %0 : vector<16x32xbf16> to vector<16x32xf32>
    %15 = arith.addf %14, %13 : vector<16x32xf32>
    %cst_11 = arith.constant dense<0.000000e+00> : vector<16xf32>
    %16 = vector.multi_reduction <add>, %15, %cst_11 [1] : vector<16x32xf32> to vector<16xf32>
    %17 = vector.shape_cast %16 : vector<16xf32> to vector<16x1xf32>
    %cst_12 = arith.constant 3.200000e+01 : f32
    %18 = vector.broadcast %cst_12 : f32 to vector<16x1xf32>
    %19 = arith.divf %17, %18 : vector<16x1xf32>
    %20 = vector.broadcast %19 : vector<16x1xf32> to vector<16x32xf32>
    %21 = arith.subf %15, %20 : vector<16x32xf32>
    %22 = arith.mulf %21, %21 : vector<16x32xf32>
    %cst_13 = arith.constant dense<0.000000e+00> : vector<16xf32>
    %23 = vector.multi_reduction <add>, %22, %cst_13 [1] : vector<16x32xf32> to vector<16xf32>
    %24 = vector.shape_cast %23 : vector<16xf32> to vector<16x1xf32>
    %cst_14 = arith.constant 3.200000e+01 : f32
    %25 = vector.broadcast %cst_14 : f32 to vector<16x1xf32>
    %26 = arith.divf %24, %25 : vector<16x1xf32>
    %27 = vector.broadcast %19 : vector<16x1xf32> to vector<16x32xf32>
    %28 = arith.subf %15, %27 : vector<16x32xf32>
    %cst_15 = arith.constant 9.99999974E-6 : f32
    %29 = vector.broadcast %cst_15 : f32 to vector<16x1xf32>
    %30 = arith.addf %26, %29 : vector<16x1xf32>
    %31 = math.rsqrt %30 : vector<16x1xf32>
    %32 = vector.broadcast %31 : vector<16x1xf32> to vector<16x32xf32>
    %33 = arith.mulf %28, %32 : vector<16x32xf32>
    %c0_16 = arith.constant 0 : index
    %c0_17 = arith.constant 0 : index
    %34 = vector.load %arg6[%c0_16, %c0_17] : memref<1x32xf32, #tpu.memory_space<vmem>>, vector<1x32xf32>
    %35 = vector.broadcast %34 : vector<1x32xf32> to vector<16x32xf32>
    %36 = arith.mulf %33, %35 : vector<16x32xf32>
    %c0_18 = arith.constant 0 : index
    %c0_19 = arith.constant 0 : index
    %37 = vector.load %arg7[%c0_18, %c0_19] : memref<1x32xf32, #tpu.memory_space<vmem>>, vector<1x32xf32>
    %38 = vector.broadcast %37 : vector<1x32xf32> to vector<16x32xf32>
    %39 = arith.addf %36, %38 : vector<16x32xf32>
    %40 = arith.truncf %39 : vector<16x32xf32> to vector<16x32xbf16>
    %c0_20 = arith.constant 0 : index
    %c0_21 = arith.constant 0 : index
    %41 = vector.load %arg8[%c0_20, %c0_21] : memref<16x32xbf16, #tpu.memory_space<vmem>>, vector<16x32xbf16>
    tpu.vector_store %arg8[%c0_20, %c0_21], %40 {strides = array<i32>} : memref<16x32xbf16, #tpu.memory_space<vmem>>, vector<16x32xbf16>,
    return
  }
  func.func @transform_0(%arg0: i32) -> (i32, i32) {
    %c0_i32 = arith.constant 0 : i32
    %c0_i32_0 = arith.constant 0 : i32
    return %arg0, %c0_i32 : i32, i32
  }
  func.func @transform_1(%arg0: i32) -> (i32, i32) {
    %c0_i32 = arith.constant 0 : i32
    %c0_i32_0 = arith.constant 0 : i32
    %c0_i32_1 = arith.constant 0 : i32
    return %c0_i32, %c0_i32_0 : i32, i32
  }
  func.func @transform_2(%arg0: i32) -> (i32, i32) {
    %c0_i32 = arith.constant 0 : i32
    %c0_i32_0 = arith.constant 0 : i32
    %c0_i32_1 = arith.constant 0 : i32
    return %c0_i32, %c0_i32_0 : i32, i32
  }
  func.func @transform_3(%arg0: i32) -> (i32, i32) {
    %c0_i32 = arith.constant 0 : i32
    %c0_i32_0 = arith.constant 0 : i32
    %c0_i32_1 = arith.constant 0 : i32
    return %c0_i32, %c0_i32_0 : i32, i32
  }
  func.func @transform_4(%arg0: i32) -> (i32, i32) {
    %c0_i32 = arith.constant 0 : i32
    %c0_i32_0 = arith.constant 0 : i32
    %c0_i32_1 = arith.constant 0 : i32
    return %c0_i32, %c0_i32_0 : i32, i32
  }
  func.func @transform_5(%arg0: i32) -> (i32, i32) {
    %c0_i32 = arith.constant 0 : i32
    %c0_i32_0 = arith.constant 0 : i32
    %c0_i32_1 = arith.constant 0 : i32
    return %c0_i32, %c0_i32_0 : i32, i32
  }
  func.func @transform_6(%arg0: i32) -> (i32, i32) {
    %c0_i32 = arith.constant 0 : i32
    %c0_i32_0 = arith.constant 0 : i32
    %c0_i32_1 = arith.constant 0 : i32
    return %c0_i32, %c0_i32_0 : i32, i32
  }
  func.func @transform_7(%arg0: i32) -> (i32, i32) {
    %c0_i32 = arith.constant 0 : i32
    %c0_i32_0 = arith.constant 0 : i32
    return %arg0, %c0_i32 : i32, i32
  }
}

module attributes {stable_mosaic.version = 11 : i64} {
  func.func @_out_softmax_kernel(%arg0: i32, %arg1: memref<16x32xbf16, #tpu.memory_space<vmem>>, %arg2: memref<32x32xbf16, #tpu.memory_space<vmem>>, %arg3: memref<1x32xf32, #tpu.memory_space<vmem>>, %arg4: memref<16x32xf32, #tpu.memory_space<vmem>>) attributes {dimension_semantics = [#tpu.dimension_semantics<parallel>], iteration_bounds = array<i64: 1>, scalar_prefetch = 0 : i64, scratch_operands = 0 : i64, tpu.core_type = #tpu.core_type<tc>, window_params = [{transform_indices = @transform_0, window_bounds = array<i64: 16, 32>}, {pipeline_mode = #tpu.pipeline_mode<synchronous>, transform_indices = @transform_1, window_bounds = array<i64: 32, 32>}, {pipeline_mode = #tpu.pipeline_mode<synchronous>, transform_indices = @transform_2, window_bounds = array<i64: 1, 32>}, {transform_indices = @transform_3, window_bounds = array<i64: 16, 32>}]} {
    %c0 = arith.constant 0 : index
    %c0_0 = arith.constant 0 : index
    %0 = vector.load %arg1[%c0, %c0_0] : memref<16x32xbf16, #tpu.memory_space<vmem>>, vector<16x32xbf16>
    %c0_1 = arith.constant 0 : index
    %c0_2 = arith.constant 0 : index
    %1 = vector.load %arg2[%c0_1, %c0_2] : memref<32x32xbf16, #tpu.memory_space<vmem>>, vector<32x32xbf16>
    %cst = arith.constant dense<0.000000e+00> : vector<16x32xf32>
    %2 = tpu.matmul %0, %1, %cst {dimension_numbers = #tpu.dot_dimension_numbers<[1], [0], [0], [1], [0, 0, 1, 1], [], []>} : vector<16x32xbf16>, vector<32x32xbf16>, vector<16x32xf32> -> vector<16x32xf32>
    %c0_3 = arith.constant 0 : index
    %c0_4 = arith.constant 0 : index
    %3 = vector.load %arg3[%c0_3, %c0_4] : memref<1x32xf32, #tpu.memory_space<vmem>>, vector<1x32xf32>
    %4 = vector.broadcast %3 : vector<1x32xf32> to vector<16x32xf32>
    %5 = arith.addf %2, %4 : vector<16x32xf32>
    %cst_5 = arith.constant dense<0xFF800000> : vector<16xf32>
    %6 = vector.multi_reduction <maximumf>, %5, %cst_5 [1] : vector<16x32xf32> to vector<16xf32>
    %7 = vector.shape_cast %6 : vector<16xf32> to vector<16x1xf32>
    %8 = vector.broadcast %7 : vector<16x1xf32> to vector<16x32xf32>
    %9 = arith.subf %5, %8 : vector<16x32xf32>
    %10 = math.exp %9 : vector<16x32xf32>
    %cst_6 = arith.constant dense<0.000000e+00> : vector<16xf32>
    %11 = vector.multi_reduction <add>, %10, %cst_6 [1] : vector<16x32xf32> to vector<16xf32>
    %12 = vector.shape_cast %11 : vector<16xf32> to vector<16x1xf32>
    %cst_7 = arith.constant 1.000000e+00 : f32
    %13 = vector.broadcast %cst_7 : f32 to vector<16x1xf32>
    %14 = arith.divf %13, %12 : vector<16x1xf32>
    %15 = vector.broadcast %14 : vector<16x1xf32> to vector<16x32xf32>
    %16 = arith.mulf %10, %15 : vector<16x32xf32>
    %c0_8 = arith.constant 0 : index
    %c0_9 = arith.constant 0 : index
    %17 = vector.load %arg4[%c0_8, %c0_9] : memref<16x32xf32, #tpu.memory_space<vmem>>, vector<16x32xf32>
    tpu.vector_store %arg4[%c0_8, %c0_9], %16 {strides = array<i32>} : memref<16x32xf32, #tpu.memory_space<vmem>>, vector<16x32xf32>,
    return
  }
  func.func @transform_0(%arg0: i32) -> (i32, i32) {
    %c0_i32 = arith.constant 0 : i32
    %c0_i32_0 = arith.constant 0 : i32
    return %arg0, %c0_i32 : i32, i32
  }
  func.func @transform_1(%arg0: i32) -> (i32, i32) {
    %c0_i32 = arith.constant 0 : i32
    %c0_i32_0 = arith.constant 0 : i32
    %c0_i32_1 = arith.constant 0 : i32
    return %c0_i32, %c0_i32_0 : i32, i32
  }
  func.func @transform_2(%arg0: i32) -> (i32, i32) {
    %c0_i32 = arith.constant 0 : i32
    %c0_i32_0 = arith.constant 0 : i32
    %c0_i32_1 = arith.constant 0 : i32
    return %c0_i32, %c0_i32_0 : i32, i32
  }
  func.func @transform_3(%arg0: i32) -> (i32, i32) {
    %c0_i32 = arith.constant 0 : i32
    %c0_i32_0 = arith.constant 0 : i32
    return %arg0, %c0_i32 : i32, i32
  }
}

</mosaic_0001>

<llo_original>
// kernel: transformer_forward.21
$region0: #{transformer_forward.21}
  #allocation0 [shape = 'u32[]', space=smem, size = 0x4, offset = 0x4, fixed_abs, tag = 'smem constant byte address 0x4 - core index']
  #allocation1 [shape = 'u32[144,128]{1,0:T(1,128)}', space=vmem, size = 0x12000, scoped, tag = 'internal scratch']
  %s0 = inlined_call_operand.vmem [shape: bf16[16,32], index: 0, kind: input, shape index: {}]
  %s1 = inlined_call_operand.vmem [shape: bf16[32,32], index: 1, kind: input, shape index: {}]
  %s2 = inlined_call_operand.vmem [shape: f32[1,32], index: 2, kind: input, shape index: {}]
  %s3 = inlined_call_operand.hbm [shape: f32[16,32], index: 3, kind: output, shape index: {}]
  %s4 = sld [smem:[#allocation0]]
  $region22: #{transformer_forward.21} parent=0
    _
  %s6 = ssub.s32 1, %s4
  %s7 = scalar_select 0, %s6, %s4
  $region1: #{transformer_forward.21} parent=0
    #allocation2 [shape = 'u8[8192]{0}', space=vmem, size = 0x2000, scoped, tag = 'output window, operand 0, single buffered']
    #allocation3 [shape = 's32[1]{0}', space=sflag, size = 0x4, scoped, tag = 'scoped memory for transformer_forward.21']
    %8 = vsyncpa [#allocation3], 0
    // Predicated region
    $region2: #{transformer_forward.21} parent=1 // pred_check
      _
    $region3: #{transformer_forward.21} parent=1 // pred_check_branch
      %10 = sbr.rel (0) target = $region5
    $region4: #{transformer_forward.21} parent=1 // pred_region
      _
    $region5: #{transformer_forward.21} parent=1 // pred_fallthru
      _
    // Predicated region
    $region6: #{transformer_forward.21} parent=1 // pred_check
      _
    $region7: #{transformer_forward.21} parent=1 // pred_check_branch
      %12 = sbr.rel (0) target = $region9
    $region8: #{transformer_forward.21} parent=1 // pred_region
      _
    $region9: #{transformer_forward.21} parent=1 // pred_fallthru
      _
    // Predicated region
    $region10: #{transformer_forward.21} parent=1 // pred_check
      _
    $region11: #{transformer_forward.21} parent=1 // pred_check_branch
      %14 = sbr.rel (0) target = $region13
    $region12: #{transformer_forward.21} parent=1 // pred_region
      _
    $region13: #{transformer_forward.21} parent=1 // pred_fallthru
      _
    %v16 = vld [vmem:[%s0] sm:$0xf]
    %v17 = vld [vmem:[%s0 + $0x4] sm:$0xf]
    %v18 = vld [vmem:[%s1] sm:$0xf]
    %v19 = vld [vmem:[%s1 + $0x4] sm:$0xf]
    %v20 = vld [vmem:[%s1 + $0x8] sm:$0xf]
    %v21 = vld [vmem:[%s1 + $0xc] sm:$0xf]
    %v22 = vld [vmem:[%s2] sm:$0x1]
    %v24 = vlaneseq
    %v25 = vshrl.u32 %v24, 7
    %v26 = vsub.s32 0, %v25
    %v27 = vrot.slane %v22, %v26
    %v31 = vunpack.c.l.b16 %v16
    %v32 = vunpack.c.l.b16 %v17
    %v33 = vpack.c.b16 %v32, %v31
    %v38 = vunpack.c.l.b16 %v18
    %v39 = vunpack.c.l.b16 %v19
    %v40 = vunpack.c.l.b16 %v20
    %v41 = vunpack.c.l.b16 %v21
    %v42 = vpack.c.b16 %v39, %v38
    %v43 = vpack.c.b16 %v41, %v40
    %vm46 = vcmask 261120
    %v48 = vsel %vm46, %v33, 0
    %50 = vmatprep.subr.bf16.mxu0 0
    %51 = vmatpush1.bf16.msra.mxu0 %v42
    %52 = vmatprep.subr.bf16.mxu0 0
    %53 = vmatpush1.bf16.msra.mxu0 %v43
    %54 = vmatprep.subr.bf16.mxu0 0
    %55 = vmatpush1.bf16.msra.mxu0 0
    %56 = vmatprep.subr.bf16.mxu0 0
    %57 = vmatpush1.bf16.msra.mxu0 0
    %58 = vmatprep.subr.bf16.mxu0 0
    %59 = vmatpush1.bf16.msra.mxu0 0
    %60 = vmatprep.subr.bf16.mxu0 0
    %61 = vmatpush1.bf16.msra.mxu0 0
    %62 = vmatprep.subr.bf16.mxu0 0
    %63 = vmatpush1.bf16.msra.mxu0 0
    %64 = vmatprep.subr.bf16.mxu0 0
    %65 = vmatpush1.bf16.msra.mxu0 0
    %66 = vmatprep.subr.bf16.mxu0 0
    %67 = vmatpush1.bf16.msra.mxu0 0
    %68 = vmatprep.subr.bf16.mxu0 0
    %69 = vmatpush1.bf16.msra.mxu0 0
    %70 = vmatprep.subr.bf16.mxu0 0
    %71 = vmatpush1.bf16.msra.mxu0 0
    %72 = vmatprep.subr.bf16.mxu0 0
    %73 = vmatpush1.bf16.msra.mxu0 0
    %74 = vmatprep.subr.bf16.mxu0 0
    %75 = vmatpush1.bf16.msra.mxu0 0
    %76 = vmatprep.subr.bf16.mxu0 0
    %77 = vmatpush1.bf16.msra.mxu0 0
    %78 = vmatprep.subr.bf16.mxu0 0
    %79 = vmatpush1.bf16.msra.mxu0 0
    %80 = vmatprep.subr.bf16.mxu0 0
    %81 = vmatpush1.bf16.msra.mxu0 0
    %82 = vmatprep.mubr.bf16.mxu0 0
    %83 = vmatmul.mubr.bf16.gmra.mrb[0].mxu0 %v48
    %v84 = vpop.f32.mrb[0].mxu0
    %v85 = vadd.f32 %v27, %v84
    %v86 = vpop.f32.mrb[0].mxu0
    %v87 = vpop.f32.mrb[0].mxu0
    %v88 = vadd.f32 %v27, %v87
    %v89 = vpop.f32.mrb[0].mxu0
    %90 = vdwg.mxu0
    %v91 = vsel %vm46, %v85, -inf
    %92 = vmax.xlane.f32.xlu0 %v91
    %v93 = vpop.xlane.xlu0 %92
    %v94 = vsel %vm46, %v88, -inf
    %95 = vmax.xlane.f32.xlu0 %v94
    %v96 = vpop.xlane.xlu0 %95
    %v97 = vsub.f32 %v85, %v93
    %v98 = vsub.f32 %v88, %v96
    %v99 = vmul.f32 %v97, 1.442695
    %v100 = vpow.pop %v99
    %v101 = vmul.f32 %v98, 1.442695
    %v102 = vpow.pop %v101
    %v103 = vsel %vm46, %v100, 0.0
    %104 = vadd.xlane.f32.xlu0 %v103
    %v105 = vpop.xlane.xlu0 %104
    %v106 = vsel %vm46, %v102, 0.0
    %107 = vadd.xlane.f32.xlu0 %v106
    %v108 = vpop.xlane.xlu0 %107
    %v109 = vrcp.pop %v105
    %v110 = vmul.f32 1.0, %v109
    %v111 = vrcp.pop %v108
    %v112 = vmul.f32 1.0, %v111
    %v113 = vmul.f32 %v100, %v110
    %v114 = vmul.f32 %v102, %v112
    %115 = vst.msk [vmem:[#allocation2] sm:$0xff] %vm46, %v113
    %116 = vst.msk [vmem:[#allocation2 + $0x8] sm:$0xff] %vm46, %v114
    // Predicated region
    $region14: #{transformer_forward.21} parent=1 // pred_check
      _
    $region15: #{transformer_forward.21} parent=1 // pred_check_branch
      %118 = sbr.rel (0) target = $region17
    $region16: #{transformer_forward.21} parent=1 // pred_region
      %s120 = ssub.s32 256, 256
      %121 = vsyncadd [#allocation3], %s120
      %s122 = sshll.u32 [#allocation2], 4
      %s123 = int_to_ptr.vmem [resolvable:$true] %s122
      %128 = dma.vmem_to_hbm [thread:$0]  %s123, 256, %s3, [#allocation3], 128, 128, 8
    $region17: #{transformer_forward.21} parent=1 // pred_fallthru
      _
    // Predicated region
    $region18: #{transformer_forward.21} parent=1 // pred_check
      _
    $region19: #{transformer_forward.21} parent=1 // pred_check_branch
      %130 = sbr.rel (0) target = $region21
    $region20: #{transformer_forward.21} parent=1 // pred_region
      %131 = dma.done [#allocation3], 256
    $region21: #{transformer_forward.21} parent=1 // pred_fallthru
      _
    %132 = vsyncpa [#allocation3], 1

// kernel: transformer_forward.12
$region0: #{transformer_forward.12}
  #allocation0 [shape = 'u32[]', space=smem, size = 0x4, offset = 0x4, fixed_abs, tag = 'smem constant byte address 0x4 - core index']
  #allocation1 [shape = 'u32[144,128]{1,0:T(1,128)}', space=vmem, size = 0x12000, scoped, tag = 'internal scratch']
  %s0 = inlined_call_operand.vmem [shape: bf16[16,32], index: 0, kind: input, shape index: {}]
  %s1 = inlined_call_operand.vmem [shape: bf16[32,64], index: 1, kind: input, shape index: {}]
  %s2 = inlined_call_operand.vmem [shape: f32[1,64], index: 2, kind: input, shape index: {}]
  %s3 = inlined_call_operand.vmem [shape: bf16[64,32], index: 3, kind: input, shape index: {}]
  %s4 = inlined_call_operand.vmem [shape: f32[1,32], index: 4, kind: input, shape index: {}]
  %s5 = inlined_call_operand.vmem [shape: f32[1,32], index: 5, kind: input, shape index: {}]
  %s6 = inlined_call_operand.vmem [shape: f32[1,32], index: 6, kind: input, shape index: {}]
  %s7 = inlined_call_operand.vmem [shape: bf16[16,32], index: 7, kind: output, shape index: {}]
  %s8 = sld [smem:[#allocation0]]
  $region38: #{transformer_forward.12} parent=0
    _
  %s10 = ssub.s32 1, %s8
  %s11 = scalar_select 0, %s10, %s8
  // Predicated region
  $region2: #{transformer_forward.12} parent=0 // pred_check
    _
  $region3: #{transformer_forward.12} parent=0 // pred_check_branch
    %13 = sbr.rel (0) target = $region5
  $region4: #{transformer_forward.12} parent=0 // pred_region
    _
  $region5: #{transformer_forward.12} parent=0 // pred_fallthru
    _
  // Predicated region
  $region6: #{transformer_forward.12} parent=0 // pred_check
    _
  $region7: #{transformer_forward.12} parent=0 // pred_check_branch
    %15 = sbr.rel (0) target = $region9
  $region8: #{transformer_forward.12} parent=0 // pred_region
    _
  $region9: #{transformer_forward.12} parent=0 // pred_fallthru
    _
  // Predicated region
  $region10: #{transformer_forward.12} parent=0 // pred_check
    _
  $region11: #{transformer_forward.12} parent=0 // pred_check_branch
    %17 = sbr.rel (0) target = $region13
  $region12: #{transformer_forward.12} parent=0 // pred_region
    _
  $region13: #{transformer_forward.12} parent=0 // pred_fallthru
    _
  // Predicated region
  $region14: #{transformer_forward.12} parent=0 // pred_check
    _
  $region15: #{transformer_forward.12} parent=0 // pred_check_branch
    %19 = sbr.rel (0) target = $region17
  $region16: #{transformer_forward.12} parent=0 // pred_region
    _
  $region17: #{transformer_forward.12} parent=0 // pred_fallthru
    _
  // Predicated region
  $region18: #{transformer_forward.12} parent=0 // pred_check
    _
  $region19: #{transformer_forward.12} parent=0 // pred_check_branch
    %21 = sbr.rel (0) target = $region21
  $region20: #{transformer_forward.12} parent=0 // pred_region
    _
  $region21: #{transformer_forward.12} parent=0 // pred_fallthru
    _
  // Predicated region
  $region22: #{transformer_forward.12} parent=0 // pred_check
    _
  $region23: #{transformer_forward.12} parent=0 // pred_check_branch
    %23 = sbr.rel (0) target = $region25
  $region24: #{transformer_forward.12} parent=0 // pred_region
    _
  $region25: #{transformer_forward.12} parent=0 // pred_fallthru
    _
  // Predicated region
  $region26: #{transformer_forward.12} parent=0 // pred_check
    _
  $region27: #{transformer_forward.12} parent=0 // pred_check_branch
    %25 = sbr.rel (0) target = $region29
  $region28: #{transformer_forward.12} parent=0 // pred_region
    _
  $region29: #{transformer_forward.12} parent=0 // pred_fallthru
    _
  %v27 = vld [vmem:[%s0] sm:$0xf]
  %v28 = vld [vmem:[%s0 + $0x4] sm:$0xf]
  %v29 = vld [vmem:[%s1] sm:$0xf]
  %v30 = vld [vmem:[%s1 + $0x4] sm:$0xf]
  %v31 = vld [vmem:[%s1 + $0x8] sm:$0xf]
  %v32 = vld [vmem:[%s1 + $0xc] sm:$0xf]
  %v33 = vld [vmem:[%s2] sm:$0x1]
  %v35 = vlaneseq
  %v36 = vshrl.u32 %v35, 7
  %v37 = vsub.s32 0, %v36
  %v38 = vrot.slane %v33, %v37
  %v42 = vunpack.c.l.b16 %v27
  %v43 = vunpack.c.l.b16 %v28
  %v44 = vpack.c.b16 %v43, %v42
  %v49 = vunpack.c.l.b16 %v29
  %v50 = vunpack.c.l.b16 %v30
  %v51 = vunpack.c.l.b16 %v31
  %v52 = vunpack.c.l.b16 %v32
  %v53 = vpack.c.b16 %v50, %v49
  %v54 = vpack.c.b16 %v52, %v51
  %vm57 = vcmask 261120
  %v59 = vsel %vm57, %v44, 0
  %61 = vmatprep.subr.bf16.mxu0 0
  %62 = vmatpush1.bf16.msra.mxu0 %v53
  %63 = vmatprep.subr.bf16.mxu0 0
  %64 = vmatpush1.bf16.msra.mxu0 %v54
  %65 = vmatprep.subr.bf16.mxu0 0
  %66 = vmatpush1.bf16.msra.mxu0 0
  %67 = vmatprep.subr.bf16.mxu0 0
  %68 = vmatpush1.bf16.msra.mxu0 0
  %69 = vmatprep.subr.bf16.mxu0 0
  %70 = vmatpush1.bf16.msra.mxu0 0
  %71 = vmatprep.subr.bf16.mxu0 0
  %72 = vmatpush1.bf16.msra.mxu0 0
  %73 = vmatprep.subr.bf16.mxu0 0
  %74 = vmatpush1.bf16.msra.mxu0 0
  %75 = vmatprep.subr.bf16.mxu0 0
  %76 = vmatpush1.bf16.msra.mxu0 0
  %77 = vmatprep.subr.bf16.mxu0 0
  %78 = vmatpush1.bf16.msra.mxu0 0
  %79 = vmatprep.subr.bf16.mxu0 0
  %80 = vmatpush1.bf16.msra.mxu0 0
  %81 = vmatprep.subr.bf16.mxu0 0
  %82 = vmatpush1.bf16.msra.mxu0 0
  %83 = vmatprep.subr.bf16.mxu0 0
  %84 = vmatpush1.bf16.msra.mxu0 0
  %85 = vmatprep.subr.bf16.mxu0 0
  %86 = vmatpush1.bf16.msra.mxu0 0
  %87 = vmatprep.subr.bf16.mxu0 0
  %88 = vmatpush1.bf16.msra.mxu0 0
  %89 = vmatprep.subr.bf16.mxu0 0
  %90 = vmatpush1.bf16.msra.mxu0 0
  %91 = vmatprep.subr.bf16.mxu0 0
  %92 = vmatpush1.bf16.msra.mxu0 0
  %93 = vmatprep.mubr.bf16.mxu0 0
  %94 = vmatmul.mubr.bf16.gmra.mrb[0].mxu0 %v59
  %v95 = vpop.f32.mrb[0].mxu0
  %v96 = vadd.f32 %v38, %v95
  %v97 = vpop.f32.mrb[0].mxu0
  %v98 = vpop.f32.mrb[0].mxu0
  %v99 = vadd.f32 %v38, %v98
  %v100 = vpop.f32.mrb[0].mxu0
  %101 = vdwg.mxu0
  %v102 = vmax.f32 %v96, 0.0
  %v103 = vmax.f32 %v99, 0.0
  %v104 = vpack.c.bf16 %v103, %v102
  %v105 = vld [vmem:[%s3] sm:$0xf]
  %v106 = vld [vmem:[%s3 + $0x4] sm:$0xf]
  %v107 = vld [vmem:[%s3 + $0x8] sm:$0xf]
  %v108 = vld [vmem:[%s3 + $0xc] sm:$0xf]
  %v109 = vld [vmem:[%s3 + $0x10] sm:$0xf]
  %v110 = vld [vmem:[%s3 + $0x14] sm:$0xf]
  %v111 = vld [vmem:[%s3 + $0x18] sm:$0xf]
  %v112 = vld [vmem:[%s3 + $0x1c] sm:$0xf]
  %v113 = vld [vmem:[%s4] sm:$0x1]
  %v115 = vlaneseq
  %v116 = vshrl.u32 %v115, 7
  %v117 = vsub.s32 0, %v116
  %v118 = vrot.slane %v113, %v117
  %v128 = vunpack.c.l.b16 %v105
  %v129 = vunpack.c.l.b16 %v106
  %v130 = vunpack.c.l.b16 %v107
  %v131 = vunpack.c.l.b16 %v108
  %v132 = vunpack.c.l.b16 %v109
  %v133 = vunpack.c.l.b16 %v110
  %v134 = vunpack.c.l.b16 %v111
  %v135 = vunpack.c.l.b16 %v112
  %v136 = vpack.c.b16 %v129, %v128
  %v137 = vpack.c.b16 %v131, %v130
  %v138 = vpack.c.b16 %v133, %v132
  %v139 = vpack.c.b16 %v135, %v134
  %vm144 = vcmask 523264
  %v146 = vsel %vm144, %v104, 0
  %148 = vmatprep.subr.bf16.mxu0 0
  %149 = vmatpush1.bf16.msra.mxu0 %v136
  %150 = vmatprep.subr.bf16.mxu0 0
  %151 = vmatpush1.bf16.msra.mxu0 %v137
  %152 = vmatprep.subr.bf16.mxu0 0
  %153 = vmatpush1.bf16.msra.mxu0 %v138
  %154 = vmatprep.subr.bf16.mxu0 0
  %155 = vmatpush1.bf16.msra.mxu0 %v139
  %156 = vmatprep.subr.bf16.mxu0 0
  %157 = vmatpush1.bf16.msra.mxu0 0
  %158 = vmatprep.subr.bf16.mxu0 0
  %159 = vmatpush1.bf16.msra.mxu0 0
  %160 = vmatprep.subr.bf16.mxu0 0
  %161 = vmatpush1.bf16.msra.mxu0 0
  %162 = vmatprep.subr.bf16.mxu0 0
  %163 = vmatpush1.bf16.msra.mxu0 0
  %164 = vmatprep.subr.bf16.mxu0 0
  %165 = vmatpush1.bf16.msra.mxu0 0
  %166 = vmatprep.subr.bf16.mxu0 0
  %167 = vmatpush1.bf16.msra.mxu0 0
  %168 = vmatprep.subr.bf16.mxu0 0
  %169 = vmatpush1.bf16.msra.mxu0 0
  %170 = vmatprep.subr.bf16.mxu0 0
  %171 = vmatpush1.bf16.msra.mxu0 0
  %172 = vmatprep.subr.bf16.mxu0 0
  %173 = vmatpush1.bf16.msra.mxu0 0
  %174 = vmatprep.subr.bf16.mxu0 0
  %175 = vmatpush1.bf16.msra.mxu0 0
  %176 = vmatprep.subr.bf16.mxu0 0
  %177 = vmatpush1.bf16.msra.mxu0 0
  %178 = vmatprep.subr.bf16.mxu0 0
  %179 = vmatpush1.bf16.msra.mxu0 0
  %180 = vmatprep.mubr.bf16.mxu0 0
  %181 = vmatmul.mubr.bf16.gmra.mrb[0].mxu0 %v146
  %v182 = vpop.f32.mrb[0].mxu0
  %v183 = vadd.f32 %v118, %v182
  %v184 = vpop.f32.mrb[0].mxu0
  %v185 = vpop.f32.mrb[0].mxu0
  %v186 = vadd.f32 %v118, %v185
  %v187 = vpop.f32.mrb[0].mxu0
  %188 = vdwg.mxu0
  %v189 = vunpack.c.l.bf16 %v27
  %v190 = vunpack.c.l.bf16 %v28
  %v191 = vadd.f32 %v189, %v183
  %v192 = vadd.f32 %v190, %v186
  %v193 = vsel %vm57, %v191, 0.0
  %194 = vadd.xlane.f32.xlu0 %v193
  %v195 = vpop.xlane.xlu0 %194
  %v196 = vsel %vm57, %v192, 0.0
  %197 = vadd.xlane.f32.xlu0 %v196
  %v198 = vpop.xlane.xlu0 %197
  %v199 = vrcp.pop 32.0
  %v200 = vmul.f32 %v195, %v199
  %v201 = vmul.f32 %v198, %v199
  %v202 = vsub.f32 %v191, %v200
  %v203 = vsub.f32 %v192, %v201
  %v204 = vmul.f32 %v202, %v202
  %v205 = vmul.f32 %v203, %v203
  %v206 = vsel %vm57, %v204, 0.0
  %207 = vadd.xlane.f32.xlu0 %v206
  %v208 = vpop.xlane.xlu0 %207
  %v209 = vsel %vm57, %v205, 0.0
  %210 = vadd.xlane.f32.xlu0 %v209
  %v211 = vpop.xlane.xlu0 %210
  %v212 = vmul.f32 %v208, %v199
  %v213 = vmul.f32 %v211, %v199
  %v214 = vadd.f32 %v212, 1e-05
  %v215 = vadd.f32 %v213, 1e-05
  %v216 = vrsqrt.pop %v214
  %v217 = vrsqrt.pop %v215
  %v218 = vmul.f32 %v202, %v216
  %v219 = vmul.f32 %v203, %v217
  %v220 = vld [vmem:[%s5] sm:$0x1]
  %v222 = vlaneseq
  %v223 = vshrl.u32 %v222, 7
  %v224 = vsub.s32 0, %v223
  %v225 = vrot.slane %v220, %v224
  %v227 = vmul.f32 %v218, %v225
  %v228 = vmul.f32 %v219, %v225
  %v229 = vld [vmem:[%s6] sm:$0x1]
  %v231 = vlaneseq
  %v232 = vshrl.u32 %v231, 7
  %v233 = vsub.s32 0, %v232
  %v234 = vrot.slane %v229, %v233
  %v236 = vadd.f32 %v227, %v234
  %v237 = vadd.f32 %v228, %v234
  %v238 = vpack.c.bf16 %v237, %v236
  %v240 = vunpack.c.l.b16 %v238
  %v241 = vunpack.c.h.b16 %v238
  %v242 = vpack.c.b16 %v240, %v240
  %v243 = vpack.c.b16 %v241, %v241
  %vm246 = vcmask 257024
  %247 = vst.msk [vmem:[%s7] sm:$0xf] %vm246, %v242
  %248 = vst.msk [vmem:[%s7 + $0x4] sm:$0xf] %vm246, %v243
  // Predicated region
  $region30: #{transformer_forward.12} parent=0 // pred_check
    _
  $region31: #{transformer_forward.12} parent=0 // pred_check_branch
    %250 = sbr.rel (0) target = $region33
  $region32: #{transformer_forward.12} parent=0 // pred_region
    _
  $region33: #{transformer_forward.12} parent=0 // pred_fallthru
    _
  // Predicated region
  $region34: #{transformer_forward.12} parent=0 // pred_check
    _
  $region35: #{transformer_forward.12} parent=0 // pred_check_branch
    %252 = sbr.rel (0) target = $region37
  $region36: #{transformer_forward.12} parent=0 // pred_region
    _
  $region37: #{transformer_forward.12} parent=0 // pred_fallthru
    _

// kernel: transformer_forward.11
$region0: #{transformer_forward.11}
  #allocation0 [shape = 'u32[]', space=smem, size = 0x4, offset = 0x4, fixed_abs, tag = 'smem constant byte address 0x4 - core index']
  #allocation1 [shape = 'u32[144,128]{1,0:T(1,128)}', space=vmem, size = 0x12000, scoped, tag = 'internal scratch']
  %s0 = inlined_call_operand.vmem [shape: bf16[2,8,32], index: 0, kind: input, shape index: {}, may-alias: {0,1}]
  %s1 = inlined_call_operand.vmem [shape: bf16[2,8,32], index: 1, kind: input, shape index: {}, may-alias: {0,1}]
  %s2 = inlined_call_operand.vmem [shape: bf16[32,32], index: 2, kind: input, shape index: {}]
  %s3 = inlined_call_operand.vmem [shape: f32[1,32], index: 3, kind: input, shape index: {}]
  %s4 = inlined_call_operand.vmem [shape: bf16[32,64], index: 4, kind: input, shape index: {}]
  %s5 = inlined_call_operand.vmem [shape: f32[1,64], index: 5, kind: input, shape index: {}]
  %s6 = inlined_call_operand.vmem [shape: bf16[32,32], index: 6, kind: input, shape index: {}]
  %s7 = inlined_call_operand.vmem [shape: f32[1,32], index: 7, kind: input, shape index: {}]
  %s8 = inlined_call_operand.vmem [shape: f32[1,32], index: 8, kind: input, shape index: {}]
  %s9 = inlined_call_operand.vmem [shape: f32[1,32], index: 9, kind: input, shape index: {}]
  %s10 = inlined_call_operand.vmem [shape: bf16[2,8,32], index: 10, kind: output, shape index: {}]
  %s11 = sld [smem:[#allocation0]]
  $region73: #{transformer_forward.11} parent=0
    _
  %s13 = ssub.s32 1, %s11
  %s14 = scalar_select 0, %s13, %s11
  loop: start=0, step=1, limit=4
  $region2: #{transformer_forward.11} parent=0 // loop_pre_header
    _
  $region3: #{transformer_forward.11} parent=0 // loop_header
    %s16 = sphi 0, %s20
    %p17 = scmp.ge.s32.totalorder %s16, 4
    %s23 = sphi 0, %s35
    %s24 = sphi 0, %s31
    %s25 = sphi 0, %s23
    %s26 = sphi 0, %s24
    %s27 = sphi 0, %s25
    %s28 = sphi 0, %s26
    %s40 = sphi 0, %s42
    %s43 = sphi 0, %s40
    %s44 = sphi 0, %s43
    %s60 = sphi 0, %s44
    %s66 = sphi 0, %s68
    %s69 = sphi 0, %s66
    %s70 = sphi 0, %s69
    %s86 = sphi 0, %s70
    %s90 = sphi 0, %s90
    %s92 = sphi 0, %s90
    %s93 = sphi 0, %s92
    %s107 = sphi 0, %s93
    %s111 = sphi 0, %s111
    %s113 = sphi 0, %s111
    %s114 = sphi 0, %s113
    %s128 = sphi 0, %s114
    %s132 = sphi 0, %s132
    %s134 = sphi 0, %s132
    %s135 = sphi 0, %s134
    %s149 = sphi 0, %s135
    %s153 = sphi 0, %s153
    %s155 = sphi 0, %s153
    %s156 = sphi 0, %s155
    %s170 = sphi 0, %s156
    %s174 = sphi 0, %s174
    %s176 = sphi 0, %s174
    %s177 = sphi 0, %s176
    %s191 = sphi 0, %s177
    %s195 = sphi 0, %s195
    %s197 = sphi 0, %s195
    %s198 = sphi 0, %s197
    %s212 = sphi 0, %s198
    %s216 = sphi 0, %s216
    %s218 = sphi 0, %s216
    %s219 = sphi 0, %s218
    %s233 = sphi 0, %s219
    %s237 = sphi 0, %s237
    %s239 = sphi 0, %s237
    %s240 = sphi 0, %s239
    %s254 = sphi 0, %s240
    %s262 = sphi 0, %s264
    %s265 = sphi 0, %s262
    %s266 = sphi 0, %s265
    %s282 = sphi 0, %s266
  $region4: #{transformer_forward.11} parent=0 // loop_header_branch
    %19 = sbr.rel (%p17) target = $region8
  $region5: #{transformer_forward.11} parent=0 // loop_body
    %s21 = ssub.s32 %s16, 1
    %s22 = ssub.s32 %s16, 2
    %s29 = sadd.s32 1, %s24
    %p30 = scmp.ge.s32.totalorder %s29, 1
    %s31 = scalar_select %p30, 0, %s29
    %s32 = sadd.s32 1, %s23
    %s33 = scalar_select %p30, %s32, %s23
    %p34 = scmp.ge.s32.totalorder %s33, 2
    %s35 = scalar_select %p34, 0, %s33
    %s36 = ssub.s32 %s23, %s35
    %s37 = ssub.s32 %s24, %s31
    %s38 = sor.u32 %s36, %s37
    %p39 = scmp.eq.s32.totalorder %s38, 0
    %s41 = sadd.s32 %s40, 1
    %s42 = scalar_select %p39, %s40, %s41
    %p45 = pneg %p39
    %p46 = scmp.eq.s32.totalorder %s16, 1
    %p47 = por %p45, %p46
    %p48 = scmp.ne.s32.totalorder %s40, %s43
    %p49 = scmp.eq.s32.totalorder %s16, 0
    %p50 = por %p48, %p49
    %p51 = scmp.ne.s32.totalorder %s40, %s43
    %p52 = scmp.eq.s32.totalorder %s21, 1
    %p53 = por %p51, %p52
    %p54 = scmp.ne.s32.totalorder %s43, %s44
    %p55 = scmp.eq.s32.totalorder %s21, 0
    %p56 = por %p54, %p55
    %p57 = scmp.ne.s32.totalorder %s43, %s44
    %p58 = scmp.eq.s32.totalorder %s22, 1
    %p59 = por %p57, %p58
    %p61 = scmp.ne.s32.totalorder %s44, %s60
    %p62 = scmp.eq.s32.totalorder %s22, 0
    %p63 = por %p61, %p62
    %s64 = ssub.s32 %s23, %s35
    %p65 = scmp.eq.s32.totalorder %s64, 0
    %s67 = sadd.s32 %s66, 1
    %s68 = scalar_select %p65, %s66, %s67
    %p71 = pneg %p65
    %p72 = scmp.eq.s32.totalorder %s16, 1
    %p73 = por %p71, %p72
    %p74 = scmp.ne.s32.totalorder %s66, %s69
    %p75 = scmp.eq.s32.totalorder %s16, 0
    %p76 = por %p74, %p75
    %p77 = scmp.ne.s32.totalorder %s66, %s69
    %p78 = scmp.eq.s32.totalorder %s21, 1
    %p79 = por %p77, %p78
    %p80 = scmp.ne.s32.totalorder %s69, %s70
    %p81 = scmp.eq.s32.totalorder %s21, 0
    %p82 = por %p80, %p81
    %p83 = scmp.ne.s32.totalorder %s69, %s70
    %p84 = scmp.eq.s32.totalorder %s22, 1
    %p85 = por %p83, %p84
    %p87 = scmp.ne.s32.totalorder %s70, %s86
    %p88 = scmp.eq.s32.totalorder %s22, 0
    %p89 = por %p87, %p88
    %s91 = sadd.s32 %s90, 1
    %p94 = scmp.eq.s32.totalorder %s16, 1
    %p95 = scmp.ne.s32.totalorder %s90, %s92
    %p96 = scmp.eq.s32.totalorder %s16, 0
    %p97 = por %p95, %p96
    %p98 = scmp.ne.s32.totalorder %s90, %s92
    %p99 = scmp.eq.s32.totalorder %s21, 1
    %p100 = por %p98, %p99
    %p101 = scmp.ne.s32.totalorder %s92, %s93
    %p102 = scmp.eq.s32.totalorder %s21, 0
    %p103 = por %p101, %p102
    %p104 = scmp.ne.s32.totalorder %s92, %s93
    %p105 = scmp.eq.s32.totalorder %s22, 1
    %p106 = por %p104, %p105
    %p108 = scmp.ne.s32.totalorder %s93, %s107
    %p109 = scmp.eq.s32.totalorder %s22, 0
    %p110 = por %p108, %p109
    %s112 = sadd.s32 %s111, 1
    %p115 = scmp.eq.s32.totalorder %s16, 1
    %p116 = scmp.ne.s32.totalorder %s111, %s113
    %p117 = scmp.eq.s32.totalorder %s16, 0
    %p118 = por %p116, %p117
    %p119 = scmp.ne.s32.totalorder %s111, %s113
    %p120 = scmp.eq.s32.totalorder %s21, 1
    %p121 = por %p119, %p120
    %p122 = scmp.ne.s32.totalorder %s113, %s114
    %p123 = scmp.eq.s32.totalorder %s21, 0
    %p124 = por %p122, %p123
    %p125 = scmp.ne.s32.totalorder %s113, %s114
    %p126 = scmp.eq.s32.totalorder %s22, 1
    %p127 = por %p125, %p126
    %p129 = scmp.ne.s32.totalorder %s114, %s128
    %p130 = scmp.eq.s32.totalorder %s22, 0
    %p131 = por %p129, %p130
    %s133 = sadd.s32 %s132, 1
    %p136 = scmp.eq.s32.totalorder %s16, 1
    %p137 = scmp.ne.s32.totalorder %s132, %s134
    %p138 = scmp.eq.s32.totalorder %s16, 0
    %p139 = por %p137, %p138
    %p140 = scmp.ne.s32.totalorder %s132, %s134
    %p141 = scmp.eq.s32.totalorder %s21, 1
    %p142 = por %p140, %p141
    %p143 = scmp.ne.s32.totalorder %s134, %s135
    %p144 = scmp.eq.s32.totalorder %s21, 0
    %p145 = por %p143, %p144
    %p146 = scmp.ne.s32.totalorder %s134, %s135
    %p147 = scmp.eq.s32.totalorder %s22, 1
    %p148 = por %p146, %p147
    %p150 = scmp.ne.s32.totalorder %s135, %s149
    %p151 = scmp.eq.s32.totalorder %s22, 0
    %p152 = por %p150, %p151
    %s154 = sadd.s32 %s153, 1
    %p157 = scmp.eq.s32.totalorder %s16, 1
    %p158 = scmp.ne.s32.totalorder %s153, %s155
    %p159 = scmp.eq.s32.totalorder %s16, 0
    %p160 = por %p158, %p159
    %p161 = scmp.ne.s32.totalorder %s153, %s155
    %p162 = scmp.eq.s32.totalorder %s21, 1
    %p163 = por %p161, %p162
    %p164 = scmp.ne.s32.totalorder %s155, %s156
    %p165 = scmp.eq.s32.totalorder %s21, 0
    %p166 = por %p164, %p165
    %p167 = scmp.ne.s32.totalorder %s155, %s156
    %p168 = scmp.eq.s32.totalorder %s22, 1
    %p169 = por %p167, %p168
    %p171 = scmp.ne.s32.totalorder %s156, %s170
    %p172 = scmp.eq.s32.totalorder %s22, 0
    %p173 = por %p171, %p172
    %s175 = sadd.s32 %s174, 1
    %p178 = scmp.eq.s32.totalorder %s16, 1
    %p179 = scmp.ne.s32.totalorder %s174, %s176
    %p180 = scmp.eq.s32.totalorder %s16, 0
    %p181 = por %p179, %p180
    %p182 = scmp.ne.s32.totalorder %s174, %s176
    %p183 = scmp.eq.s32.totalorder %s21, 1
    %p184 = por %p182, %p183
    %p185 = scmp.ne.s32.totalorder %s176, %s177
    %p186 = scmp.eq.s32.totalorder %s21, 0
    %p187 = por %p185, %p186
    %p188 = scmp.ne.s32.totalorder %s176, %s177
    %p189 = scmp.eq.s32.totalorder %s22, 1
    %p190 = por %p188, %p189
    %p192 = scmp.ne.s32.totalorder %s177, %s191
    %p193 = scmp.eq.s32.totalorder %s22, 0
    %p194 = por %p192, %p193
    %s196 = sadd.s32 %s195, 1
    %p199 = scmp.eq.s32.totalorder %s16, 1
    %p200 = scmp.ne.s32.totalorder %s195, %s197
    %p201 = scmp.eq.s32.totalorder %s16, 0
    %p202 = por %p200, %p201
    %p203 = scmp.ne.s32.totalorder %s195, %s197
    %p204 = scmp.eq.s32.totalorder %s21, 1
    %p205 = por %p203, %p204
    %p206 = scmp.ne.s32.totalorder %s197, %s198
    %p207 = scmp.eq.s32.totalorder %s21, 0
    %p208 = por %p206, %p207
    %p209 = scmp.ne.s32.totalorder %s197, %s198
    %p210 = scmp.eq.s32.totalorder %s22, 1
    %p211 = por %p209, %p210
    %p213 = scmp.ne.s32.totalorder %s198, %s212
    %p214 = scmp.eq.s32.totalorder %s22, 0
    %p215 = por %p213, %p214
    %s217 = sadd.s32 %s216, 1
    %p220 = scmp.eq.s32.totalorder %s16, 1
    %p221 = scmp.ne.s32.totalorder %s216, %s218
    %p222 = scmp.eq.s32.totalorder %s16, 0
    %p223 = por %p221, %p222
    %p224 = scmp.ne.s32.totalorder %s216, %s218
    %p225 = scmp.eq.s32.totalorder %s21, 1
    %p226 = por %p224, %p225
    %p227 = scmp.ne.s32.totalorder %s218, %s219
    %p228 = scmp.eq.s32.totalorder %s21, 0
    %p229 = por %p227, %p228
    %p230 = scmp.ne.s32.totalorder %s218, %s219
    %p231 = scmp.eq.s32.totalorder %s22, 1
    %p232 = por %p230, %p231
    %p234 = scmp.ne.s32.totalorder %s219, %s233
    %p235 = scmp.eq.s32.totalorder %s22, 0
    %p236 = por %p234, %p235
    %s238 = sadd.s32 %s237, 1
    %p241 = scmp.eq.s32.totalorder %s16, 1
    %p242 = scmp.ne.s32.totalorder %s237, %s239
    %p243 = scmp.eq.s32.totalorder %s16, 0
    %p244 = por %p242, %p243
    %p245 = scmp.ne.s32.totalorder %s237, %s239
    %p246 = scmp.eq.s32.totalorder %s21, 1
    %p247 = por %p245, %p246
    %p248 = scmp.ne.s32.totalorder %s239, %s240
    %p249 = scmp.eq.s32.totalorder %s21, 0
    %p250 = por %p248, %p249
    %p251 = scmp.ne.s32.totalorder %s239, %s240
    %p252 = scmp.eq.s32.totalorder %s22, 1
    %p253 = por %p251, %p252
    %p255 = scmp.ne.s32.totalorder %s240, %s254
    %p256 = scmp.eq.s32.totalorder %s22, 0
    %p257 = por %p255, %p256
    %s258 = ssub.s32 %s23, %s35
    %s259 = ssub.s32 %s24, %s31
    %s260 = sor.u32 %s258, %s259
    %p261 = scmp.eq.s32.totalorder %s260, 0
    %s263 = sadd.s32 %s262, 1
    %s264 = scalar_select %p261, %s262, %s263
    %p267 = pneg %p261
    %p268 = scmp.eq.s32.totalorder %s16, 1
    %p269 = por %p267, %p268
    %p270 = scmp.ne.s32.totalorder %s262, %s265
    %p271 = scmp.eq.s32.totalorder %s16, 0
    %p272 = por %p270, %p271
    %p273 = scmp.ne.s32.totalorder %s262, %s265
    %p274 = scmp.eq.s32.totalorder %s21, 1
    %p275 = por %p273, %p274
    %p276 = scmp.ne.s32.totalorder %s265, %s266
    %p277 = scmp.eq.s32.totalorder %s21, 0
    %p278 = por %p276, %p277
    %p279 = scmp.ne.s32.totalorder %s265, %s266
    %p280 = scmp.eq.s32.totalorder %s22, 1
    %p281 = por %p279, %p280
    %p283 = scmp.ne.s32.totalorder %s266, %s282
    %p284 = scmp.eq.s32.totalorder %s22, 0
    %p285 = por %p283, %p284
    %p286 = scmp.le.s32.totalorder 1, %s16
    %p287 = scmp.lt.s32.totalorder %s16, 3
    %p288 = pnand %p286, %p287
    %p289 = pneg %p288
    // Predicated region
    $region9: #{transformer_forward.11} parent=5 // pred_check
      _
    $region10: #{transformer_forward.11} parent=5 // pred_check_branch
      %291 = sbr.rel (%p288) target = $region12
    $region11: #{transformer_forward.11} parent=5 // pred_region
      %s292 = ssub.s32 %s16, 1
      // Predicated region
      $region13: #{transformer_forward.11} parent=11 // pred_check
        %p293 = pneg %p103
      $region14: #{transformer_forward.11} parent=11 // pred_check_branch
        %295 = sbr.rel (%p293) target = $region16
      $region15: #{transformer_forward.11} parent=11 // pred_region
        _
      $region16: #{transformer_forward.11} parent=11 // pred_fallthru
        _
      // Predicated region
      $region17: #{transformer_forward.11} parent=11 // pred_check
        %p296 = pneg %p124
      $region18: #{transformer_forward.11} parent=11 // pred_check_branch
        %298 = sbr.rel (%p296) target = $region20
      $region19: #{transformer_forward.11} parent=11 // pred_region
        _
      $region20: #{transformer_forward.11} parent=11 // pred_fallthru
        _
      // Predicated region
      $region21: #{transformer_forward.11} parent=11 // pred_check
        %p299 = pneg %p145
      $region22: #{transformer_forward.11} parent=11 // pred_check_branch
        %301 = sbr.rel (%p299) target = $region24
      $region23: #{transformer_forward.11} parent=11 // pred_region
        _
      $region24: #{transformer_forward.11} parent=11 // pred_fallthru
        _
      // Predicated region
      $region25: #{transformer_forward.11} parent=11 // pred_check
        %p302 = pneg %p166
      $region26: #{transformer_forward.11} parent=11 // pred_check_branch
        %304 = sbr.rel (%p302) target = $region28
      $region27: #{transformer_forward.11} parent=11 // pred_region
        _
      $region28: #{transformer_forward.11} parent=11 // pred_fallthru
        _
      // Predicated region
      $region29: #{transformer_forward.11} parent=11 // pred_check
        %p305 = pneg %p187
      $region30: #{transformer_forward.11} parent=11 // pred_check_branch
        %307 = sbr.rel (%p305) target = $region32
      $region31: #{transformer_forward.11} parent=11 // pred_region
        _
      $region32: #{transformer_forward.11} parent=11 // pred_fallthru
        _
      // Predicated region
      $region33: #{transformer_forward.11} parent=11 // pred_check
        %p308 = pneg %p208
      $region34: #{transformer_forward.11} parent=11 // pred_check_branch
        %310 = sbr.rel (%p308) target = $region36
      $region35: #{transformer_forward.11} parent=11 // pred_region
        _
      $region36: #{transformer_forward.11} parent=11 // pred_fallthru
        _
      // Predicated region
      $region37: #{transformer_forward.11} parent=11 // pred_check
        %p311 = pneg %p229
      $region38: #{transformer_forward.11} parent=11 // pred_check_branch
        %313 = sbr.rel (%p311) target = $region40
      $region39: #{transformer_forward.11} parent=11 // pred_region
        _
      $region40: #{transformer_forward.11} parent=11 // pred_fallthru
        _
      // Predicated region
      $region41: #{transformer_forward.11} parent=11 // pred_check
        %p314 = pneg %p250
      $region42: #{transformer_forward.11} parent=11 // pred_check_branch
        %316 = sbr.rel (%p314) target = $region44
      $region43: #{transformer_forward.11} parent=11 // pred_region
        _
      $region44: #{transformer_forward.11} parent=11 // pred_fallthru
        _
    $region12: #{transformer_forward.11} parent=5 // pred_fallthru
      _
    %p317 = scmp.lt.s32.totalorder %s16, 2
    // Predicated region
    $region45: #{transformer_forward.11} parent=5 // pred_check
      %p318 = pneg %p317
    $region46: #{transformer_forward.11} parent=5 // pred_check_branch
      %320 = sbr.rel (%p318) target = $region48
    $region47: #{transformer_forward.11} parent=5 // pred_region
      // Predicated region
      $region49: #{transformer_forward.11} parent=47 // pred_check
        %p321 = pneg %p50
      $region50: #{transformer_forward.11} parent=47 // pred_check_branch
        %323 = sbr.rel (%p321) target = $region52
      $region51: #{transformer_forward.11} parent=47 // pred_region
        %p324 = scmp.lt.s32.totalorder %s23, 1
        %s325 = scalar_select %p324, %s23, 1
        %p326 = scmp.lt.s32.totalorder %s24, 0
        %s327 = scalar_select %p326, %s24, 0
        %s328 = sadd.s32 %s327, %s325
        %s329 = smul.addr %s328, 4
        %s330 = scalar_lea.vmem %s0, %s329
      $region52: #{transformer_forward.11} parent=47 // pred_fallthru
        _
      // Predicated region
      $region53: #{transformer_forward.11} parent=47 // pred_check
        %p331 = pneg %p76
      $region54: #{transformer_forward.11} parent=47 // pred_check_branch
        %333 = sbr.rel (%p331) target = $region56
      $region55: #{transformer_forward.11} parent=47 // pred_region
        %p334 = scmp.lt.s32.totalorder %s23, 1
        %s335 = scalar_select %p334, %s23, 1
        %s336 = smul.addr %s335, 4
        %s337 = scalar_lea.vmem %s1, %s336
      $region56: #{transformer_forward.11} parent=47 // pred_fallthru
        _
    $region48: #{transformer_forward.11} parent=5 // pred_fallthru
      _
    %p338 = scmp.le.s32.totalorder 1, %s16
    %p339 = scmp.lt.s32.totalorder %s16, 3
    %p340 = pnand %p338, %p339
    %p341 = pneg %p340
    // Predicated region
    $region57: #{transformer_forward.11} parent=5 // pred_check
      _
    $region58: #{transformer_forward.11} parent=5 // pred_check_branch
      %343 = sbr.rel (%p340) target = $region60
    $region59: #{transformer_forward.11} parent=5 // pred_region
      %s344 = ssub.s32 %s16, 1
      %p345 = scmp.lt.s32.totalorder %s25, 1
      %s346 = scalar_select %p345, %s25, 1
      %p347 = scmp.lt.s32.totalorder %s26, 0
      %s348 = scalar_select %p347, %s26, 0
      %s349 = sadd.s32 %s348, %s346
      %s350 = smul.addr %s349, 4
      %s351 = scalar_lea.vmem %s0, %s350
      %p352 = pneg %p56
      %p353 = pneg %p53
      %p354 = scmp.lt.s32.totalorder %s25, 1
      %s355 = scalar_select %p354, %s25, 1
      %s356 = smul.addr %s355, 4
      %s357 = scalar_lea.vmem %s1, %s356
      %p358 = pneg %p82
      %p359 = pneg %p79
      %p360 = pneg %p103
      %p361 = pneg %p100
      %p362 = pneg %p124
      %p363 = pneg %p121
      %p364 = pneg %p145
      %p365 = pneg %p142
      %p366 = pneg %p166
      %p367 = pneg %p163
      %p368 = pneg %p187
      %p369 = pneg %p184
      %p370 = pneg %p208
      %p371 = pneg %p205
      %p372 = pneg %p229
      %p373 = pneg %p226
      %p374 = pneg %p250
      %p375 = pneg %p247
      %p376 = pneg %p278
      %p377 = pneg %p275
      %p378 = scmp.lt.s32.totalorder %s25, 1
      %s379 = scalar_select %p378, %s25, 1
      %p380 = scmp.lt.s32.totalorder %s26, 0
      %s381 = scalar_select %p380, %s26, 0
      %s382 = sadd.s32 %s381, %s379
      %s383 = smul.addr %s382, 4
      %s384 = scalar_lea.vmem %s10, %s383
      %p385 = scmp.lt.s32.totalorder %s25, 1
      %s386 = scalar_select %p385, %s25, 1
      %p387 = scmp.lt.s32.totalorder %s26, 0
      %s388 = scalar_select %p387, %s26, 0
      %s389 = sadd.s32 %s388, %s386
      %s390 = smul.addr %s389, 4
      %s391 = scalar_lea.vmem %s0, %s390
      %p392 = scmp.lt.s32.totalorder %s25, 1
      %s393 = scalar_select %p392, %s25, 1
      %s394 = smul.addr %s393, 4
      %s395 = scalar_lea.vmem %s1, %s394
      %p396 = scmp.lt.s32.totalorder %s25, 1
      %s397 = scalar_select %p396, %s25, 1
      %p398 = scmp.lt.s32.totalorder %s26, 0
      %s399 = scalar_select %p398, %s26, 0
      %s400 = sadd.s32 %s399, %s397
      %s401 = smul.addr %s400, 4
      %s402 = scalar_lea.vmem %s10, %s401
      %v404 = vld [vmem:[%s391] sm:$0xf]
      %v405 = vld [vmem:[%s395] sm:$0xf]
      %v406 = vld [vmem:[%s2] sm:$0xf]
      %v407 = vld [vmem:[%s2 + $0x4] sm:$0xf]
      %v408 = vld [vmem:[%s2 + $0x8] sm:$0xf]
      %v409 = vld [vmem:[%s2 + $0xc] sm:$0xf]
      %v410 = vld [vmem:[%s3] sm:$0x1]
      %v412 = vlaneseq
      %v413 = vshrl.u32 %v412, 7
      %v414 = vsub.s32 0, %v413
      %v415 = vrot.slane %v410, %v414
      %v421 = vunpack.c.l.b16 %v406
      %v422 = vunpack.c.l.b16 %v407
      %v423 = vunpack.c.l.b16 %v408
      %v424 = vunpack.c.l.b16 %v409
      %v425 = vpack.c.b16 %v422, %v421
      %v426 = vpack.c.b16 %v424, %v423
      %vm429 = vcmask 261120
      %v431 = vsel %vm429, %v404, 0
      %433 = vmatprep.subr.bf16.mxu0 0
      %434 = vmatpush1.bf16.msra.mxu0 %v425
      %435 = vmatprep.subr.bf16.mxu0 0
      %436 = vmatpush1.bf16.msra.mxu0 %v426
      %437 = vmatprep.subr.bf16.mxu0 0
      %438 = vmatpush1.bf16.msra.mxu0 0
      %439 = vmatprep.subr.bf16.mxu0 0
      %440 = vmatpush1.bf16.msra.mxu0 0
      %441 = vmatprep.subr.bf16.mxu0 0
      %442 = vmatpush1.bf16.msra.mxu0 0
      %443 = vmatprep.subr.bf16.mxu0 0
      %444 = vmatpush1.bf16.msra.mxu0 0
      %445 = vmatprep.subr.bf16.mxu0 0
      %446 = vmatpush1.bf16.msra.mxu0 0
      %447 = vmatprep.subr.bf16.mxu0 0
      %448 = vmatpush1.bf16.msra.mxu0 0
      %449 = vmatprep.subr.bf16.mxu0 0
      %450 = vmatpush1.bf16.msra.mxu0 0
      %451 = vmatprep.subr.bf16.mxu0 0
      %452 = vmatpush1.bf16.msra.mxu0 0
      %453 = vmatprep.subr.bf16.mxu0 0
      %454 = vmatpush1.bf16.msra.mxu0 0
      %455 = vmatprep.subr.bf16.mxu0 0
      %456 = vmatpush1.bf16.msra.mxu0 0
      %457 = vmatprep.subr.bf16.mxu0 0
      %458 = vmatpush1.bf16.msra.mxu0 0
      %459 = vmatprep.subr.bf16.mxu0 0
      %460 = vmatpush1.bf16.msra.mxu0 0
      %461 = vmatprep.subr.bf16.mxu0 0
      %462 = vmatpush1.bf16.msra.mxu0 0
      %463 = vmatprep.subr.bf16.mxu0 0
      %464 = vmatpush1.bf16.msra.mxu0 0
      %465 = vmatprep.mubr.bf16.mxu0 0
      %466 = vmatmul.mubr.bf16.gmra.mrb[0].mxu0 %v431
      %v467 = vpop.f32.mrb[0].mxu0
      %v468 = vadd.f32 %v415, %v467
      %v469 = vpop.f32.mrb[0].mxu0
      %v470 = vpop.f32.mrb[0].mxu0
      %v471 = vpop.f32.mrb[0].mxu0
      %472 = vdwg.mxu0
      %v473 = vld [vmem:[%s4] sm:$0xf]
      %v474 = vld [vmem:[%s4 + $0x4] sm:$0xf]
      %v475 = vld [vmem:[%s4 + $0x8] sm:$0xf]
      %v476 = vld [vmem:[%s4 + $0xc] sm:$0xf]
      %v477 = vld [vmem:[%s5] sm:$0x1]
      %v479 = vlaneseq
      %v480 = vshrl.u32 %v479, 7
      %v481 = vsub.s32 0, %v480
      %v482 = vrot.slane %v477, %v481
      %v488 = vunpack.c.l.b16 %v473
      %v489 = vunpack.c.l.b16 %v474
      %v490 = vunpack.c.l.b16 %v475
      %v491 = vunpack.c.l.b16 %v476
      %v492 = vpack.c.b16 %v489, %v488
      %v493 = vpack.c.b16 %v491, %v490
      %v497 = vsel %vm429, %v405, 0
      %499 = vmatprep.subr.bf16.mxu0 0
      %500 = vmatpush1.bf16.msra.mxu0 %v492
      %501 = vmatprep.subr.bf16.mxu0 0
      %502 = vmatpush1.bf16.msra.mxu0 %v493
      %503 = vmatprep.subr.bf16.mxu0 0
      %504 = vmatpush1.bf16.msra.mxu0 0
      %505 = vmatprep.subr.bf16.mxu0 0
      %506 = vmatpush1.bf16.msra.mxu0 0
      %507 = vmatprep.subr.bf16.mxu0 0
      %508 = vmatpush1.bf16.msra.mxu0 0
      %509 = vmatprep.subr.bf16.mxu0 0
      %510 = vmatpush1.bf16.msra.mxu0 0
      %511 = vmatprep.subr.bf16.mxu0 0
      %512 = vmatpush1.bf16.msra.mxu0 0
      %513 = vmatprep.subr.bf16.mxu0 0
      %514 = vmatpush1.bf16.msra.mxu0 0
      %515 = vmatprep.subr.bf16.mxu0 0
      %516 = vmatpush1.bf16.msra.mxu0 0
      %517 = vmatprep.subr.bf16.mxu0 0
      %518 = vmatpush1.bf16.msra.mxu0 0
      %519 = vmatprep.subr.bf16.mxu0 0
      %520 = vmatpush1.bf16.msra.mxu0 0
      %521 = vmatprep.subr.bf16.mxu0 0
      %522 = vmatpush1.bf16.msra.mxu0 0
      %523 = vmatprep.subr.bf16.mxu0 0
      %524 = vmatpush1.bf16.msra.mxu0 0
      %525 = vmatprep.subr.bf16.mxu0 0
      %526 = vmatpush1.bf16.msra.mxu0 0
      %527 = vmatprep.subr.bf16.mxu0 0
      %528 = vmatpush1.bf16.msra.mxu0 0
      %529 = vmatprep.subr.bf16.mxu0 0
      %530 = vmatpush1.bf16.msra.mxu0 0
      %531 = vmatprep.mubr.bf16.mxu0 0
      %532 = vmatmul.mubr.bf16.gmra.mrb[0].mxu0 %v497
      %v533 = vpop.f32.mrb[0].mxu0
      %v534 = vadd.f32 %v482, %v533
      %v535 = vpop.f32.mrb[0].mxu0
      %v536 = vpop.f32.mrb[0].mxu0
      %v537 = vpop.f32.mrb[0].mxu0
      %538 = vdwg.mxu0
      %v539 = vpack.c.bf16 %v468, %v468
      %v540 = vpack.c.bf16 %v534, %v534
      %vm541 = vcmask 64512
      %v543 = vsel %vm541, %v539, 0
      %v546 = vsel %vm541, %v540, 0
      %548 = vmatprep.subr.bf16.mxu0 0
      %549 = vmatpush1.bf16.xpose.msra.mxu0 %v546
      %550 = vmatprep.subr.bf16.mxu0 0
      %551 = vmatpush1.bf16.xpose.msra.mxu0 0
      %552 = vmatprep.subr.bf16.mxu0 0
      %553 = vmatpush1.bf16.xpose.msra.mxu0 0
      %554 = vmatprep.subr.bf16.mxu0 0
      %555 = vmatpush1.bf16.xpose.msra.mxu0 0
      %556 = vmatprep.subr.bf16.mxu0 0
      %557 = vmatpush1.bf16.xpose.msra.mxu0 0
      %558 = vmatprep.subr.bf16.mxu0 0
      %559 = vmatpush1.bf16.xpose.msra.mxu0 0
      %560 = vmatprep.subr.bf16.mxu0 0
      %561 = vmatpush1.bf16.xpose.msra.mxu0 0
      %562 = vmatprep.subr.bf16.mxu0 0
      %563 = vmatpush1.bf16.xpose.msra.mxu0 0
      %564 = vmatprep.subr.bf16.mxu0 0
      %565 = vmatpush1.bf16.xpose.msra.mxu0 0
      %566 = vmatprep.subr.bf16.mxu0 0
      %567 = vmatpush1.bf16.xpose.msra.mxu0 0
      %568 = vmatprep.subr.bf16.mxu0 0
      %569 = vmatpush1.bf16.xpose.msra.mxu0 0
      %570 = vmatprep.subr.bf16.mxu0 0
      %571 = vmatpush1.bf16.xpose.msra.mxu0 0
      %572 = vmatprep.subr.bf16.mxu0 0
      %573 = vmatpush1.bf16.xpose.msra.mxu0 0
      %574 = vmatprep.subr.bf16.mxu0 0
      %575 = vmatpush1.bf16.xpose.msra.mxu0 0
      %576 = vmatprep.subr.bf16.mxu0 0
      %577 = vmatpush1.bf16.xpose.msra.mxu0 0
      %578 = vmatprep.subr.bf16.mxu0 0
      %579 = vmatpush1.bf16.xpose.msra.mxu0 0
      %580 = vmatprep.mubr.bf16.mxu0 0
      %581 = vmatmul.mubr.bf16.gmra.mrb[0].mxu0 %v543
      %v582 = vpop.f32.mrb[0].mxu0
      %v583 = vadd.f32 0.0, %v582
      %v584 = vpop.f32.mrb[0].mxu0
      %v585 = vpop.f32.mrb[0].mxu0
      %v586 = vpop.f32.mrb[0].mxu0
      %587 = vdwg.mxu0
      %v588 = vmul.f32 %v583, 0.35355338
      %v589 = vsel %vm541, %v588, -inf
      %590 = vmax.xlane.f32.xlu0 %v589
      %v591 = vpop.xlane.xlu0 %590
      %v592 = vsub.f32 %v588, %v591
      %v593 = vmul.f32 %v592, 1.442695
      %v594 = vpow.pop %v593
      %v595 = vsel %vm541, %v594, 0.0
      %596 = vadd.xlane.f32.xlu0 %v595
      %v597 = vpop.xlane.xlu0 %596
      %v598 = vrcp.pop %v597
      %v599 = vmul.f32 %v594, %v598
      %v600 = vpack.c.bf16 %v599, %v599
      %602 = vrot.lane.b32.xlu0 %v540, 96
      %v603 = vpop.permute.xlu0 %602
      %v605 = vsel %vm541, %v600, 0
      %vm607 = vcmask 1043456
      %v609 = vsel %vm607, %v603, 0
      %611 = vmatprep.subr.bf16.mxu0 0
      %612 = vmatpush1.bf16.msra.mxu0 %v609
      %613 = vmatprep.subr.bf16.mxu0 0
      %614 = vmatpush1.bf16.msra.mxu0 0
      %615 = vmatprep.subr.bf16.mxu0 0
      %616 = vmatpush1.bf16.msra.mxu0 0
      %617 = vmatprep.subr.bf16.mxu0 0
      %618 = vmatpush1.bf16.msra.mxu0 0
      %619 = vmatprep.subr.bf16.mxu0 0
      %620 = vmatpush1.bf16.msra.mxu0 0
      %621 = vmatprep.subr.bf16.mxu0 0
      %622 = vmatpush1.bf16.msra.mxu0 0
      %623 = vmatprep.subr.bf16.mxu0 0
      %624 = vmatpush1.bf16.msra.mxu0 0
      %625 = vmatprep.subr.bf16.mxu0 0
      %626 = vmatpush1.bf16.msra.mxu0 0
      %627 = vmatprep.subr.bf16.mxu0 0
      %628 = vmatpush1.bf16.msra.mxu0 0
      %629 = vmatprep.subr.bf16.mxu0 0
      %630 = vmatpush1.bf16.msra.mxu0 0
      %631 = vmatprep.subr.bf16.mxu0 0
      %632 = vmatpush1.bf16.msra.mxu0 0
      %633 = vmatprep.subr.bf16.mxu0 0
      %634 = vmatpush1.bf16.msra.mxu0 0
      %635 = vmatprep.subr.bf16.mxu0 0
      %636 = vmatpush1.bf16.msra.mxu0 0
      %637 = vmatprep.subr.bf16.mxu0 0
      %638 = vmatpush1.bf16.msra.mxu0 0
      %639 = vmatprep.subr.bf16.mxu0 0
      %640 = vmatpush1.bf16.msra.mxu0 0
      %641 = vmatprep.subr.bf16.mxu0 0
      %642 = vmatpush1.bf16.msra.mxu0 0
      %643 = vmatprep.mubr.bf16.mxu0 0
      %644 = vmatmul.mubr.bf16.gmra.mrb[0].mxu0 %v605
      %v645 = vpop.f32.mrb[0].mxu0
      %v646 = vadd.f32 0.0, %v645
      %v647 = vpop.f32.mrb[0].mxu0
      %v648 = vpop.f32.mrb[0].mxu0
      %v649 = vpop.f32.mrb[0].mxu0
      %650 = vdwg.mxu0
      %652 = vrot.lane.b32.xlu0 %v539, 120
      %v653 = vpop.permute.xlu0 %652
      %654 = vrot.lane.b32.xlu0 %v540, 120
      %v655 = vpop.permute.xlu0 %654
      %v657 = vsel %vm541, %v653, 0
      %v660 = vsel %vm541, %v655, 0
      %662 = vmatprep.subr.bf16.mxu0 0
      %663 = vmatpush1.bf16.xpose.msra.mxu0 %v660
      %664 = vmatprep.subr.bf16.mxu0 0
      %665 = vmatpush1.bf16.xpose.msra.mxu0 0
      %666 = vmatprep.subr.bf16.mxu0 0
      %667 = vmatpush1.bf16.xpose.msra.mxu0 0
      %668 = vmatprep.subr.bf16.mxu0 0
      %669 = vmatpush1.bf16.xpose.msra.mxu0 0
      %670 = vmatprep.subr.bf16.mxu0 0
      %671 = vmatpush1.bf16.xpose.msra.mxu0 0
      %672 = vmatprep.subr.bf16.mxu0 0
      %673 = vmatpush1.bf16.xpose.msra.mxu0 0
      %674 = vmatprep.subr.bf16.mxu0 0
      %675 = vmatpush1.bf16.xpose.msra.mxu0 0
      %676 = vmatprep.subr.bf16.mxu0 0
      %677 = vmatpush1.bf16.xpose.msra.mxu0 0
      %678 = vmatprep.subr.bf16.mxu0 0
      %679 = vmatpush1.bf16.xpose.msra.mxu0 0
      %680 = vmatprep.subr.bf16.mxu0 0
      %681 = vmatpush1.bf16.xpose.msra.mxu0 0
      %682 = vmatprep.subr.bf16.mxu0 0
      %683 = vmatpush1.bf16.xpose.msra.mxu0 0
      %684 = vmatprep.subr.bf16.mxu0 0
      %685 = vmatpush1.bf16.xpose.msra.mxu0 0
      %686 = vmatprep.subr.bf16.mxu0 0
      %687 = vmatpush1.bf16.xpose.msra.mxu0 0
      %688 = vmatprep.subr.bf16.mxu0 0
      %689 = vmatpush1.bf16.xpose.msra.mxu0 0
      %690 = vmatprep.subr.bf16.mxu0 0
      %691 = vmatpush1.bf16.xpose.msra.mxu0 0
      %692 = vmatprep.subr.bf16.mxu0 0
      %693 = vmatpush1.bf16.xpose.msra.mxu0 0
      %694 = vmatprep.mubr.bf16.mxu0 0
      %695 = vmatmul.mubr.bf16.gmra.mrb[0].mxu0 %v657
      %v696 = vpop.f32.mrb[0].mxu0
      %v697 = vadd.f32 0.0, %v696
      %v698 = vpop.f32.mrb[0].mxu0
      %v699 = vpop.f32.mrb[0].mxu0
      %v700 = vpop.f32.mrb[0].mxu0
      %701 = vdwg.mxu0
      %v702 = vmul.f32 %v697, 0.35355338
      %v703 = vsel %vm541, %v702, -inf
      %704 = vmax.xlane.f32.xlu0 %v703
      %v705 = vpop.xlane.xlu0 %704
      %v706 = vsub.f32 %v702, %v705
      %v707 = vmul.f32 %v706, 1.442695
      %v708 = vpow.pop %v707
      %v709 = vsel %vm541, %v708, 0.0
      %710 = vadd.xlane.f32.xlu0 %v709
      %v711 = vpop.xlane.xlu0 %710
      %v712 = vrcp.pop %v711
      %v713 = vmul.f32 %v708, %v712
      %v714 = vpack.c.bf16 %v713, %v713
      %715 = vrot.lane.b32.xlu0 %v540, 88
      %v716 = vpop.permute.xlu0 %715
      %v718 = vsel %vm541, %v714, 0
      %v721 = vsel %vm607, %v716, 0
      %723 = vmatprep.subr.bf16.mxu0 0
      %724 = vmatpush1.bf16.msra.mxu0 %v721
      %725 = vmatprep.subr.bf16.mxu0 0
      %726 = vmatpush1.bf16.msra.mxu0 0
      %727 = vmatprep.subr.bf16.mxu0 0
      %728 = vmatpush1.bf16.msra.mxu0 0
      %729 = vmatprep.subr.bf16.mxu0 0
      %730 = vmatpush1.bf16.msra.mxu0 0
      %731 = vmatprep.subr.bf16.mxu0 0
      %732 = vmatpush1.bf16.msra.mxu0 0
      %733 = vmatprep.subr.bf16.mxu0 0
      %734 = vmatpush1.bf16.msra.mxu0 0
      %735 = vmatprep.subr.bf16.mxu0 0
      %736 = vmatpush1.bf16.msra.mxu0 0
      %737 = vmatprep.subr.bf16.mxu0 0
      %738 = vmatpush1.bf16.msra.mxu0 0
      %739 = vmatprep.subr.bf16.mxu0 0
      %740 = vmatpush1.bf16.msra.mxu0 0
      %741 = vmatprep.subr.bf16.mxu0 0
      %742 = vmatpush1.bf16.msra.mxu0 0
      %743 = vmatprep.subr.bf16.mxu0 0
      %744 = vmatpush1.bf16.msra.mxu0 0
      %745 = vmatprep.subr.bf16.mxu0 0
      %746 = vmatpush1.bf16.msra.mxu0 0
      %747 = vmatprep.subr.bf16.mxu0 0
      %748 = vmatpush1.bf16.msra.mxu0 0
      %749 = vmatprep.subr.bf16.mxu0 0
      %750 = vmatpush1.bf16.msra.mxu0 0
      %751 = vmatprep.subr.bf16.mxu0 0
      %752 = vmatpush1.bf16.msra.mxu0 0
      %753 = vmatprep.subr.bf16.mxu0 0
      %754 = vmatpush1.bf16.msra.mxu0 0
      %755 = vmatprep.mubr.bf16.mxu0 0
      %756 = vmatmul.mubr.bf16.gmra.mrb[0].mxu0 %v718
      %v757 = vpop.f32.mrb[0].mxu0
      %v758 = vadd.f32 0.0, %v757
      %v759 = vpop.f32.mrb[0].mxu0
      %v760 = vpop.f32.mrb[0].mxu0
      %v761 = vpop.f32.mrb[0].mxu0
      %762 = vdwg.mxu0
      %763 = vrot.lane.b32.xlu0 %v539, 112
      %v764 = vpop.permute.xlu0 %763
      %765 = vrot.lane.b32.xlu0 %v540, 112
      %v766 = vpop.permute.xlu0 %765
      %v768 = vsel %vm541, %v764, 0
      %v771 = vsel %vm541, %v766, 0
      %773 = vmatprep.subr.bf16.mxu0 0
      %774 = vmatpush1.bf16.xpose.msra.mxu0 %v771
      %775 = vmatprep.subr.bf16.mxu0 0
      %776 = vmatpush1.bf16.xpose.msra.mxu0 0
      %777 = vmatprep.subr.bf16.mxu0 0
      %778 = vmatpush1.bf16.xpose.msra.mxu0 0
      %779 = vmatprep.subr.bf16.mxu0 0
      %780 = vmatpush1.bf16.xpose.msra.mxu0 0
      %781 = vmatprep.subr.bf16.mxu0 0
      %782 = vmatpush1.bf16.xpose.msra.mxu0 0
      %783 = vmatprep.subr.bf16.mxu0 0
      %784 = vmatpush1.bf16.xpose.msra.mxu0 0
      %785 = vmatprep.subr.bf16.mxu0 0
      %786 = vmatpush1.bf16.xpose.msra.mxu0 0
      %787 = vmatprep.subr.bf16.mxu0 0
      %788 = vmatpush1.bf16.xpose.msra.mxu0 0
      %789 = vmatprep.subr.bf16.mxu0 0
      %790 = vmatpush1.bf16.xpose.msra.mxu0 0
      %791 = vmatprep.subr.bf16.mxu0 0
      %792 = vmatpush1.bf16.xpose.msra.mxu0 0
      %793 = vmatprep.subr.bf16.mxu0 0
      %794 = vmatpush1.bf16.xpose.msra.mxu0 0
      %795 = vmatprep.subr.bf16.mxu0 0
      %796 = vmatpush1.bf16.xpose.msra.mxu0 0
      %797 = vmatprep.subr.bf16.mxu0 0
      %798 = vmatpush1.bf16.xpose.msra.mxu0 0
      %799 = vmatprep.subr.bf16.mxu0 0
      %800 = vmatpush1.bf16.xpose.msra.mxu0 0
      %801 = vmatprep.subr.bf16.mxu0 0
      %802 = vmatpush1.bf16.xpose.msra.mxu0 0
      %803 = vmatprep.subr.bf16.mxu0 0
      %804 = vmatpush1.bf16.xpose.msra.mxu0 0
      %805 = vmatprep.mubr.bf16.mxu0 0
      %806 = vmatmul.mubr.bf16.gmra.mrb[0].mxu0 %v768
      %v807 = vpop.f32.mrb[0].mxu0
      %v808 = vadd.f32 0.0, %v807
      %v809 = vpop.f32.mrb[0].mxu0
      %v810 = vpop.f32.mrb[0].mxu0
      %v811 = vpop.f32.mrb[0].mxu0
      %812 = vdwg.mxu0
      %v813 = vmul.f32 %v808, 0.35355338
      %v814 = vsel %vm541, %v813, -inf
      %815 = vmax.xlane.f32.xlu0 %v814
      %v816 = vpop.xlane.xlu0 %815
      %v817 = vsub.f32 %v813, %v816
      %v818 = vmul.f32 %v817, 1.442695
      %v819 = vpow.pop %v818
      %v820 = vsel %vm541, %v819, 0.0
      %821 = vadd.xlane.f32.xlu0 %v820
      %v822 = vpop.xlane.xlu0 %821
      %v823 = vrcp.pop %v822
      %v824 = vmul.f32 %v819, %v823
      %v825 = vpack.c.bf16 %v824, %v824
      %826 = vrot.lane.b32.xlu0 %v540, 80
      %v827 = vpop.permute.xlu0 %826
      %v829 = vsel %vm541, %v825, 0
      %v832 = vsel %vm607, %v827, 0
      %834 = vmatprep.subr.bf16.mxu0 0
      %835 = vmatpush1.bf16.msra.mxu0 %v832
      %836 = vmatprep.subr.bf16.mxu0 0
      %837 = vmatpush1.bf16.msra.mxu0 0
      %838 = vmatprep.subr.bf16.mxu0 0
      %839 = vmatpush1.bf16.msra.mxu0 0
      %840 = vmatprep.subr.bf16.mxu0 0
      %841 = vmatpush1.bf16.msra.mxu0 0
      %842 = vmatprep.subr.bf16.mxu0 0
      %843 = vmatpush1.bf16.msra.mxu0 0
      %844 = vmatprep.subr.bf16.mxu0 0
      %845 = vmatpush1.bf16.msra.mxu0 0
      %846 = vmatprep.subr.bf16.mxu0 0
      %847 = vmatpush1.bf16.msra.mxu0 0
      %848 = vmatprep.subr.bf16.mxu0 0
      %849 = vmatpush1.bf16.msra.mxu0 0
      %850 = vmatprep.subr.bf16.mxu0 0
      %851 = vmatpush1.bf16.msra.mxu0 0
      %852 = vmatprep.subr.bf16.mxu0 0
      %853 = vmatpush1.bf16.msra.mxu0 0
      %854 = vmatprep.subr.bf16.mxu0 0
      %855 = vmatpush1.bf16.msra.mxu0 0
      %856 = vmatprep.subr.bf16.mxu0 0
      %857 = vmatpush1.bf16.msra.mxu0 0
      %858 = vmatprep.subr.bf16.mxu0 0
      %859 = vmatpush1.bf16.msra.mxu0 0
      %860 = vmatprep.subr.bf16.mxu0 0
      %861 = vmatpush1.bf16.msra.mxu0 0
      %862 = vmatprep.subr.bf16.mxu0 0
      %863 = vmatpush1.bf16.msra.mxu0 0
      %864 = vmatprep.subr.bf16.mxu0 0
      %865 = vmatpush1.bf16.msra.mxu0 0
      %866 = vmatprep.mubr.bf16.mxu0 0
      %867 = vmatmul.mubr.bf16.gmra.mrb[0].mxu0 %v829
      %v868 = vpop.f32.mrb[0].mxu0
      %v869 = vadd.f32 0.0, %v868
      %v870 = vpop.f32.mrb[0].mxu0
      %v871 = vpop.f32.mrb[0].mxu0
      %v872 = vpop.f32.mrb[0].mxu0
      %873 = vdwg.mxu0
      %874 = vrot.lane.b32.xlu0 %v539, 104
      %v875 = vpop.permute.xlu0 %874
      %876 = vrot.lane.b32.xlu0 %v540, 104
      %v877 = vpop.permute.xlu0 %876
      %v879 = vsel %vm541, %v875, 0
      %v882 = vsel %vm541, %v877, 0
      %884 = vmatprep.subr.bf16.mxu0 0
      %885 = vmatpush1.bf16.xpose.msra.mxu0 %v882
      %886 = vmatprep.subr.bf16.mxu0 0
      %887 = vmatpush1.bf16.xpose.msra.mxu0 0
      %888 = vmatprep.subr.bf16.mxu0 0
      %889 = vmatpush1.bf16.xpose.msra.mxu0 0
      %890 = vmatprep.subr.bf16.mxu0 0
      %891 = vmatpush1.bf16.xpose.msra.mxu0 0
      %892 = vmatprep.subr.bf16.mxu0 0
      %893 = vmatpush1.bf16.xpose.msra.mxu0 0
      %894 = vmatprep.subr.bf16.mxu0 0
      %895 = vmatpush1.bf16.xpose.msra.mxu0 0
      %896 = vmatprep.subr.bf16.mxu0 0
      %897 = vmatpush1.bf16.xpose.msra.mxu0 0
      %898 = vmatprep.subr.bf16.mxu0 0
      %899 = vmatpush1.bf16.xpose.msra.mxu0 0
      %900 = vmatprep.subr.bf16.mxu0 0
      %901 = vmatpush1.bf16.xpose.msra.mxu0 0
      %902 = vmatprep.subr.bf16.mxu0 0
      %903 = vmatpush1.bf16.xpose.msra.mxu0 0
      %904 = vmatprep.subr.bf16.mxu0 0
      %905 = vmatpush1.bf16.xpose.msra.mxu0 0
      %906 = vmatprep.subr.bf16.mxu0 0
      %907 = vmatpush1.bf16.xpose.msra.mxu0 0
      %908 = vmatprep.subr.bf16.mxu0 0
      %909 = vmatpush1.bf16.xpose.msra.mxu0 0
      %910 = vmatprep.subr.bf16.mxu0 0
      %911 = vmatpush1.bf16.xpose.msra.mxu0 0
      %912 = vmatprep.subr.bf16.mxu0 0
      %913 = vmatpush1.bf16.xpose.msra.mxu0 0
      %914 = vmatprep.subr.bf16.mxu0 0
      %915 = vmatpush1.bf16.xpose.msra.mxu0 0
      %916 = vmatprep.mubr.bf16.mxu0 0
      %917 = vmatmul.mubr.bf16.gmra.mrb[0].mxu0 %v879
      %v918 = vpop.f32.mrb[0].mxu0
      %v919 = vadd.f32 0.0, %v918
      %v920 = vpop.f32.mrb[0].mxu0
      %v921 = vpop.f32.mrb[0].mxu0
      %v922 = vpop.f32.mrb[0].mxu0
      %923 = vdwg.mxu0
      %v924 = vmul.f32 %v919, 0.35355338
      %v925 = vsel %vm541, %v924, -inf
      %926 = vmax.xlane.f32.xlu0 %v925
      %v927 = vpop.xlane.xlu0 %926
      %v928 = vsub.f32 %v924, %v927
      %v929 = vmul.f32 %v928, 1.442695
      %v930 = vpow.pop %v929
      %v931 = vsel %vm541, %v930, 0.0
      %932 = vadd.xlane.f32.xlu0 %v931
      %v933 = vpop.xlane.xlu0 %932
      %v934 = vrcp.pop %v933
      %v935 = vmul.f32 %v930, %v934
      %v936 = vpack.c.bf16 %v935, %v935
      %937 = vrot.lane.b32.xlu0 %v540, 72
      %v938 = vpop.permute.xlu0 %937
      %v940 = vsel %vm541, %v936, 0
      %v943 = vsel %vm607, %v938, 0
      %945 = vmatprep.subr.bf16.mxu0 0
      %946 = vmatpush1.bf16.msra.mxu0 %v943
      %947 = vmatprep.subr.bf16.mxu0 0
      %948 = vmatpush1.bf16.msra.mxu0 0
      %949 = vmatprep.subr.bf16.mxu0 0
      %950 = vmatpush1.bf16.msra.mxu0 0
      %951 = vmatprep.subr.bf16.mxu0 0
      %952 = vmatpush1.bf16.msra.mxu0 0
      %953 = vmatprep.subr.bf16.mxu0 0
      %954 = vmatpush1.bf16.msra.mxu0 0
      %955 = vmatprep.subr.bf16.mxu0 0
      %956 = vmatpush1.bf16.msra.mxu0 0
      %957 = vmatprep.subr.bf16.mxu0 0
      %958 = vmatpush1.bf16.msra.mxu0 0
      %959 = vmatprep.subr.bf16.mxu0 0
      %960 = vmatpush1.bf16.msra.mxu0 0
      %961 = vmatprep.subr.bf16.mxu0 0
      %962 = vmatpush1.bf16.msra.mxu0 0
      %963 = vmatprep.subr.bf16.mxu0 0
      %964 = vmatpush1.bf16.msra.mxu0 0
      %965 = vmatprep.subr.bf16.mxu0 0
      %966 = vmatpush1.bf16.msra.mxu0 0
      %967 = vmatprep.subr.bf16.mxu0 0
      %968 = vmatpush1.bf16.msra.mxu0 0
      %969 = vmatprep.subr.bf16.mxu0 0
      %970 = vmatpush1.bf16.msra.mxu0 0
      %971 = vmatprep.subr.bf16.mxu0 0
      %972 = vmatpush1.bf16.msra.mxu0 0
      %973 = vmatprep.subr.bf16.mxu0 0
      %974 = vmatpush1.bf16.msra.mxu0 0
      %975 = vmatprep.subr.bf16.mxu0 0
      %976 = vmatpush1.bf16.msra.mxu0 0
      %977 = vmatprep.mubr.bf16.mxu0 0
      %978 = vmatmul.mubr.bf16.gmra.mrb[0].mxu0 %v940
      %v979 = vpop.f32.mrb[0].mxu0
      %v980 = vadd.f32 0.0, %v979
      %v981 = vpop.f32.mrb[0].mxu0
      %v982 = vpop.f32.mrb[0].mxu0
      %v983 = vpop.f32.mrb[0].mxu0
      %984 = vdwg.mxu0
      %986 = vrot.lane.b32.xlu0 %v758, 8
      %v987 = vpop.permute.xlu0 %986
      %990 = vrot.lane.b32.xlu0 %v869, 16
      %v991 = vpop.permute.xlu0 %990
      %994 = vrot.lane.b32.xlu0 %v980, 24
      %v995 = vpop.permute.xlu0 %994
      %v997 = vsel %vm541, %v646, %v987
      %vm998 = vcmask 130048
      %v999 = vsel %vm998, %v997, %v991
      %vm1000 = vcmask 195584
      %v1001 = vsel %vm1000, %v999, %v995
      %v1002 = vpack.c.bf16 %v1001, %v1001
      %v1003 = vld [vmem:[%s6] sm:$0xf]
      %v1004 = vld [vmem:[%s6 + $0x4] sm:$0xf]
      %v1005 = vld [vmem:[%s6 + $0x8] sm:$0xf]
      %v1006 = vld [vmem:[%s6 + $0xc] sm:$0xf]
      %v1007 = vld [vmem:[%s7] sm:$0x1]
      %v1009 = vlaneseq
      %v1010 = vshrl.u32 %v1009, 7
      %v1011 = vsub.s32 0, %v1010
      %v1012 = vrot.slane %v1007, %v1011
      %v1018 = vunpack.c.l.b16 %v1003
      %v1019 = vunpack.c.l.b16 %v1004
      %v1020 = vunpack.c.l.b16 %v1005
      %v1021 = vunpack.c.l.b16 %v1006
      %v1022 = vpack.c.b16 %v1019, %v1018
      %v1023 = vpack.c.b16 %v1021, %v1020
      %v1027 = vsel %vm429, %v1002, 0
      %1029 = vmatprep.subr.bf16.mxu0 0
      %1030 = vmatpush1.bf16.msra.mxu0 %v1022
      %1031 = vmatprep.subr.bf16.mxu0 0
      %1032 = vmatpush1.bf16.msra.mxu0 %v1023
      %1033 = vmatprep.subr.bf16.mxu0 0
      %1034 = vmatpush1.bf16.msra.mxu0 0
      %1035 = vmatprep.subr.bf16.mxu0 0
      %1036 = vmatpush1.bf16.msra.mxu0 0
      %1037 = vmatprep.subr.bf16.mxu0 0
      %1038 = vmatpush1.bf16.msra.mxu0 0
      %1039 = vmatprep.subr.bf16.mxu0 0
      %1040 = vmatpush1.bf16.msra.mxu0 0
      %1041 = vmatprep.subr.bf16.mxu0 0
      %1042 = vmatpush1.bf16.msra.mxu0 0
      %1043 = vmatprep.subr.bf16.mxu0 0
      %1044 = vmatpush1.bf16.msra.mxu0 0
      %1045 = vmatprep.subr.bf16.mxu0 0
      %1046 = vmatpush1.bf16.msra.mxu0 0
      %1047 = vmatprep.subr.bf16.mxu0 0
      %1048 = vmatpush1.bf16.msra.mxu0 0
      %1049 = vmatprep.subr.bf16.mxu0 0
      %1050 = vmatpush1.bf16.msra.mxu0 0
      %1051 = vmatprep.subr.bf16.mxu0 0
      %1052 = vmatpush1.bf16.msra.mxu0 0
      %1053 = vmatprep.subr.bf16.mxu0 0
      %1054 = vmatpush1.bf16.msra.mxu0 0
      %1055 = vmatprep.subr.bf16.mxu0 0
      %1056 = vmatpush1.bf16.msra.mxu0 0
      %1057 = vmatprep.subr.bf16.mxu0 0
      %1058 = vmatpush1.bf16.msra.mxu0 0
      %1059 = vmatprep.subr.bf16.mxu0 0
      %1060 = vmatpush1.bf16.msra.mxu0 0
      %1061 = vmatprep.mubr.bf16.mxu0 0
      %1062 = vmatmul.mubr.bf16.gmra.mrb[0].mxu0 %v1027
      %v1063 = vpop.f32.mrb[0].mxu0
      %v1064 = vadd.f32 %v1012, %v1063
      %v1065 = vpop.f32.mrb[0].mxu0
      %v1066 = vpop.f32.mrb[0].mxu0
      %v1067 = vpop.f32.mrb[0].mxu0
      %1068 = vdwg.mxu0
      %v1069 = vunpack.c.l.bf16 %v404
      %v1070 = vadd.f32 %v1069, %v1064
      %v1071 = vsel %vm429, %v1070, 0.0
      %1072 = vadd.xlane.f32.xlu0 %v1071
      %v1073 = vpop.xlane.xlu0 %1072
      %v1074 = vrcp.pop 32.0
      %v1075 = vmul.f32 %v1073, %v1074
      %v1076 = vsub.f32 %v1070, %v1075
      %v1077 = vmul.f32 %v1076, %v1076
      %v1078 = vsel %vm429, %v1077, 0.0
      %1079 = vadd.xlane.f32.xlu0 %v1078
      %v1080 = vpop.xlane.xlu0 %1079
      %v1081 = vmul.f32 %v1080, %v1074
      %v1082 = vadd.f32 %v1081, 1e-05
      %v1083 = vrsqrt.pop %v1082
      %v1084 = vmul.f32 %v1076, %v1083
      %v1085 = vld [vmem:[%s8] sm:$0x1]
      %v1087 = vlaneseq
      %v1088 = vshrl.u32 %v1087, 7
      %v1089 = vsub.s32 0, %v1088
      %v1090 = vrot.slane %v1085, %v1089
      %v1092 = vmul.f32 %v1084, %v1090
      %v1093 = vld [vmem:[%s9] sm:$0x1]
      %v1095 = vlaneseq
      %v1096 = vshrl.u32 %v1095, 7
      %v1097 = vsub.s32 0, %v1096
      %v1098 = vrot.slane %v1093, %v1097
      %v1100 = vadd.f32 %v1092, %v1098
      %v1101 = vpack.c.bf16 %v1100, %v1100
      %vm1102 = vcmask 257024
      %1103 = vst.msk [vmem:[%s402] sm:$0xf] %vm1102, %v1101
      %p1104 = scmp.lt.s32.totalorder %s25, 1
      %s1105 = scalar_select %p1104, %s25, 1
      %p1106 = scmp.lt.s32.totalorder %s26, 0
      %s1107 = scalar_select %p1106, %s26, 0
      %s1108 = sadd.s32 %s1107, %s1105
      %s1109 = smul.addr %s1108, 4
      %s1110 = scalar_lea.vmem %s10, %s1109
      // Predicated region
      $region61: #{transformer_forward.11} parent=59 // pred_check
        %p1111 = pneg %p275
      $region62: #{transformer_forward.11} parent=59 // pred_check_branch
        %1113 = sbr.rel (%p1111) target = $region64
      $region63: #{transformer_forward.11} parent=59 // pred_region
        _
      $region64: #{transformer_forward.11} parent=59 // pred_fallthru
        _
    $region60: #{transformer_forward.11} parent=5 // pred_fallthru
      _
    %p1114 = scmp.le.s32.totalorder 2, %s16
    // Predicated region
    $region65: #{transformer_forward.11} parent=5 // pred_check
      %p1115 = pneg %p1114
    $region66: #{transformer_forward.11} parent=5 // pred_check_branch
      %1117 = sbr.rel (%p1115) target = $region68
    $region67: #{transformer_forward.11} parent=5 // pred_region
      %s1118 = ssub.s32 %s16, 2
      // Predicated region
      $region69: #{transformer_forward.11} parent=67 // pred_check
        %p1119 = pneg %p281
      $region70: #{transformer_forward.11} parent=67 // pred_check_branch
        %1121 = sbr.rel (%p1119) target = $region72
      $region71: #{transformer_forward.11} parent=67 // pred_region
        %p1122 = scmp.lt.s32.totalorder %s27, 1
        %s1123 = scalar_select %p1122, %s27, 1
        %p1124 = scmp.lt.s32.totalorder %s28, 0
        %s1125 = scalar_select %p1124, %s28, 0
        %s1126 = sadd.s32 %s1125, %s1123
        %s1127 = smul.addr %s1126, 4
        %s1128 = scalar_lea.vmem %s10, %s1127
      $region72: #{transformer_forward.11} parent=67 // pred_fallthru
        _
    $region68: #{transformer_forward.11} parent=5 // pred_fallthru
      _
  $region6: #{transformer_forward.11} parent=0 // loop_footer
    %s20 = sadd.s32 1, %s16
  $region7: #{transformer_forward.11} parent=0 // loop_footer_branch
    %15 = sbr.rel target = $region3
  $region8: #{transformer_forward.11} parent=0 // loop_exit
    _

</llo_original>
